<compile_context>
chip_gen: v6e
topology: v6e:2x2x1
jax: 0.10.0
libtpu: 0.0.40
codegen_flags: <defaults>
</compile_context>

<pallas_src>
import functools

import jax
import jax.numpy as jnp
import numpy as np
from jax.experimental import pallas as pl
from jax.experimental.pallas import tpu as pltpu


def _pair(v):
    return (v, v) if isinstance(v, int) else tuple(v)


def _lane_pad(n):
    return ((n + 127) // 128) * 128


def _sublane_pad(n):
    return ((n + 7) // 8) * 8


def _vmem_capacity_bytes():
    """Physical per-core VMEM; falls back to the smallest current part (v7x, 64 MiB)."""
    try:
        info = pltpu.get_tpu_info()
        cap = getattr(info, "vmem_capacity_bytes", None)
        if cap:
            return int(cap)
    except Exception:
        pass
    return 64 * 2**20


def _depth_avg_pool_kernel(x_ref, d_ref, dc_ref, out_ref, wgt_ref, *,
                           kh, kw, sh, sw, h_out, w_out, alpha, cb):
    # x_ref  : (Ct, Hp, Wp)      zero-padded features (one channel tile)
    # d_ref  : (Hp, Wp)          depth, pads filled with a large sentinel
    # dc_ref : (Hout, Wout)      depth at clamped-window centres
    # out_ref: (Ct, Hout, Wout)
    # wgt_ref: VMEM scratch (kh*kw, Hout, Wout)  NORMALIZED per-tap depth weights
    ci = pl.program_id(1)
    contig = (sh == 1 and sw == 1)
    ct = x_ref.shape[0]
    n_cb = ct // cb

    # ---- per-sample (first channel tile only): normalized depth weights ----
    @pl.when(ci == 0)
    def _compute_weights():
        dc = dc_ref[...].astype(jnp.float32)                      # (Hout, Wout)
        den = jnp.zeros((h_out, w_out), jnp.float32)
        if contig:
            df = d_ref[...].astype(jnp.float32)                   # cast once (hoisted)
            for dw in range(kw):
                d_dw = df[:, dw:dw + w_out]                       # lane shift once per dw
                for dh in range(kh):
                    d = d_dw[dh:dh + h_out, :]                    # sublane-only slice
                    wgt = jnp.exp(-alpha * jnp.abs(dc - d))       # == 0.0 on sentinel pads
                    wgt_ref[dh * kw + dw] = wgt
                    den = den + wgt
        else:
            # TODO(synk): strided slices -> wrapper-side phase split (see header).
            for dw in range(kw):
                for dh in range(kh):
                    d = d_ref[pl.ds(dh, h_out, sh), pl.ds(dw, w_out, sw)].astype(jnp.float32)
                    wgt = jnp.exp(-alpha * jnp.abs(dc - d))
                    wgt_ref[dh * kw + dw] = wgt
                    den = den + wgt
        inv = pl.reciprocal(den, approx=True)                     # EUP slot (~free)
        inv = inv * (2.0 - den * inv)                             # Newton step -> ~f32 exact
        for t in range(kh * kw):                                  # fold 1/den into weights
            wgt_ref[t] = wgt_ref[t] * inv

    # ---- per-channel-block accumulation: accumulator stays vreg-resident ----
    @pl.loop(0, n_cb)
    def _per_block(i):
        c0 = pl.multiple_of(i * cb, cb)
        acc = jnp.zeros((cb, h_out, w_out), jnp.float32)
        if contig:
            xb = x_ref[pl.ds(c0, cb)].astype(jnp.float32)         # (cb, Hp, Wp), cast once
            for dw in range(kw):
                x_dw = xb[:, :, dw:dw + w_out]                    # lane shift once per dw
                for dh in range(kh):
                    acc = acc + x_dw[:, dh:dh + h_out, :] * wgt_ref[dh * kw + dw][None]
        else:
            for dw in range(kw):
                for dh in range(kh):
                    x = x_ref[pl.ds(c0, cb), pl.ds(dh, h_out, sh),
                              pl.ds(dw, w_out, sw)].astype(jnp.float32)
                    acc = acc + x * wgt_ref[dh * kw + dw][None]
        out_ref[pl.ds(c0, cb)] = acc.astype(out_ref.dtype)


def _pick_tiles(c, hp, wp, h_out, w_out, kh, kw, itemsize, c_tile=None, c_block=None):
    """Pick (channel tile, channel block, vmem limit) from the VMEM footprint."""
    cap = _vmem_capacity_bytes()
    scoped_cap = min(int(0.75 * cap), 96 * 2**20)   # ~48 MiB on v7x, up to 96 MiB on v5e/v6e

    wp_l, wo_l = _lane_pad(wp), _lane_pad(w_out)
    hp_s, ho_s = _sublane_pad(hp), _sublane_pad(h_out)

    # Fixed (channel-tile independent) footprint: depth planes, centre depth,
    # normalized weight scratch, plus headroom for accumulators / temps.
    fixed = (2 * hp_s * wp_l * 4
             + 2 * ho_s * wo_l * 4
             + kh * kw * ho_s * wo_l * 4
             + (4 << 20))
    # Per-channel cost: double-buffered x tile + out tile.
    per_c = 2 * hp_s * wp_l * itemsize + 2 * ho_s * wo_l * itemsize

    if c_tile is None:
        budget = max(per_c, scoped_cap - fixed)
        ct_max = max(1, budget // per_c)
        ct = 1
        for d in range(1, c + 1):
            if c % d == 0 and d <= ct_max:
                ct = d
    else:
        assert c % c_tile == 0, "c_tile must divide C"
        ct = int(c_tile)

    if c_block is None:
        per_ch = ho_s * wo_l * 4
        cb_max = max(1, (64 << 10) // per_ch)       # live accumulator <= ~64 KiB of vregs
        cb = 1
        for d in range(1, ct + 1):
            if ct % d == 0 and d <= cb_max:
                cb = d
    else:
        assert ct % c_block == 0, "c_block must divide the channel tile"
        cb = int(c_block)

    estimate = fixed + ct * per_c
    vmem_limit = int(max(32 * 2**20, min(scoped_cap, estimate)))
    return ct, cb, vmem_limit


def depth_avg_pooling(x, depth, kernel_size, alpha=1.0, stride=1, padding=0,
                      c_tile=None, c_block=None):
    """Depth-aware average pooling.  x: (N,C,H,W), depth: (N,1,H,W)."""
    kh, kw = _pair(kernel_size)
    sh, sw = _pair(stride)
    ph, pw = _pair(padding)
    alpha = float(alpha)
    n, c, h, w = x.shape
    h_out = (h + 2 * ph - kh) // sh + 1
    w_out = (w + 2 * pw - kw) // sw + 1
    hp, wp = h + 2 * ph, w + 2 * pw

    if (ph or pw) and alpha <= 0.0:
        raise NotImplementedError("sentinel depth padding requires alpha > 0")

    # --- plain-JAX glue: zero-pad x, sentinel-pad depth, centre-depth gather ---
    x_pad = jnp.pad(x, ((0, 0), (0, 0), (ph, ph), (pw, pw)))

    depth_f = depth.astype(jnp.float32)
    if ph or pw:
        # Sentinel pad: alpha * |dc - sentinel| >= 128 > -ln(FLT_TRUE_MIN),
        # so exp underflows to exactly 0.0f for padded pixels -> no mask input.
        sentinel = jnp.max(depth_f) + jnp.float32(128.0 / alpha)
        d_pad = jnp.full((n, 1, hp, wp), sentinel, jnp.float32)
        d_pad = d_pad.at[:, :, ph:ph + h, pw:pw + w].set(depth_f)
    else:
        d_pad = depth_f

    ho = np.arange(h_out)
    wo = np.arange(w_out)
    hst = ho * sh - ph
    wst = wo * sw - pw
    hc = (np.maximum(hst, 0) + np.minimum(hst + kh, h)) // 2   # clamped-window centre
    wc = (np.maximum(wst, 0) + np.minimum(wst + kw, w)) // 2
    dc = depth_f[:, :, hc, :][:, :, :, wc]                     # (N, 1, Hout, Wout)

    itemsize = jnp.dtype(x.dtype).itemsize
    ct, cb, vmem_limit = _pick_tiles(c, hp, wp, h_out, w_out, kh, kw, itemsize,
                                     c_tile=c_tile, c_block=c_block)
    n_ct = c // ct

    kernel = functools.partial(
        _depth_avg_pool_kernel,
        kh=kh, kw=kw, sh=sh, sw=sw, h_out=h_out, w_out=w_out, alpha=alpha, cb=cb)

    cost = pl.CostEstimate(
        flops=int(2 * n * c * h_out * w_out * kh * kw),
        transcendentals=int(n * kh * kw * h_out * w_out),
        bytes_accessed=int(x_pad.size * itemsize + n * c * h_out * w_out * itemsize
                           + d_pad.size * 4 + dc.size * 4))

    return pl.pallas_call(
        kernel,
        out_shape=jax.ShapeDtypeStruct((n, c, h_out, w_out), x.dtype),
        grid=(n, n_ct),
        in_specs=[
            pl.BlockSpec((None, ct, hp, wp), lambda b, ci: (b, ci, 0, 0)),         # x tile
            pl.BlockSpec((None, None, hp, wp), lambda b, ci: (b, 0, 0, 0)),        # depth (C-resident)
            pl.BlockSpec((None, None, h_out, w_out), lambda b, ci: (b, 0, 0, 0)),  # centre depth
        ],
        out_specs=pl.BlockSpec((None, ct, h_out, w_out), lambda b, ci: (b, ci, 0, 0)),
        scratch_shapes=[
            pltpu.VMEM((kh * kw, h_out, w_out), jnp.float32),   # normalized tap weights
        ],
        compiler_params=pltpu.CompilerParams(
            dimension_semantics=("parallel", "arbitrary"),
            vmem_limit_bytes=vmem_limit),
        cost_estimate=cost,
    )(x_pad, d_pad, dc)


def _reference_numpy(x, depth, kernel_size, alpha, stride, padding):
    """Direct per-pixel port of the CUDA AvePoolForward loop (for validation)."""
    x = np.asarray(x, np.float64)
    depth = np.asarray(depth, np.float64)
    kh, kw = _pair(kernel_size)
    sh, sw = _pair(stride)
    ph, pw = _pair(padding)
    n, c, h, w = x.shape
    h_out = (h + 2 * ph - kh) // sh + 1
    w_out = (w + 2 * pw - kw) // sw + 1
    out = np.zeros((n, c, h_out, w_out), np.float64)
    for b in range(n):
        for oh in range(h_out):
            for ow in range(w_out):
                hst = oh * sh - ph
                wst = ow * sw - pw
                hend = min(hst + kh, h)
                wend = min(wst + kw, w)
                hst_c = max(hst, 0)
                wst_c = max(wst, 0)
                di = depth[b, 0, (hst_c + hend) // 2, (wst_c + wend) // 2]
                num = np.zeros(c, np.float64)
                den = 0.0
                for hh in range(hst_c, hend):
                    for ww in range(wst_c, wend):
                        wgt = np.exp(-alpha * abs(di - depth[b, 0, hh, ww]))
                        num += wgt * x[b, :, hh, ww]
                        den += wgt
                out[b, :, oh, ow] = num / den
    return out


if __name__ == "__main__":
    key = jax.random.PRNGKey(0)
    kx, kd = jax.random.split(key)

    N, C, H, W = 2, 4, 16, 16
    x = jax.random.normal(kx, (N, C, H, W), dtype=jnp.float32)
    depth = jax.random.uniform(kd, (N, 1, H, W), dtype=jnp.float32) * 5.0

    # config 1: 3x3, stride 1, pad 1, auto channel tile / channel block
    out = depth_avg_pooling(x, depth, kernel_size=3, alpha=1.0, stride=1, padding=1)
    out = jax.block_until_ready(out)
    ref = _reference_numpy(x, depth, 3, 1.0, 1, 1)
    np.testing.assert_allclose(np.asarray(out), ref, rtol=1e-4, atol=1e-4)

    # config 2: 5x5, stride 1, pad 2, forced channel tiling and per-channel
    # blocking (exercises the weight-scratch reuse across C tiles and the
    # vreg-resident channel-block loop with trip count > 1)
    out2 = depth_avg_pooling(x, depth, kernel_size=5, alpha=0.5, stride=1,
                             padding=2, c_tile=2, c_block=1)
    out2 = jax.block_until_ready(out2)
    ref2 = _reference_numpy(x, depth, 5, 0.5, 1, 2)
    np.testing.assert_allclose(np.asarray(out2), ref2, rtol=1e-4, atol=1e-4)

    print("KERNEL_OK")
</pallas_src>

<mosaic_0001>
module attributes {stable_mosaic.version = 11 : i64} {
  func.func @_depth_avg_pool_kernel(%arg0: i32, %arg1: i32, %arg2: memref<1x4x18x18xf32, #tpu.memory_space<vmem>>, %arg3: memref<1x1x18x18xf32, #tpu.memory_space<vmem>>, %arg4: memref<1x1x16x16xf32, #tpu.memory_space<vmem>>, %arg5: memref<1x4x16x16xf32, #tpu.memory_space<vmem>>, %arg6: memref<9x16x16xf32, #tpu.memory_space<vmem>>) attributes {dimension_semantics = [#tpu.dimension_semantics<parallel>, #tpu.dimension_semantics<arbitrary>], iteration_bounds = array<i64: 2, 1>, scalar_prefetch = 0 : i64, scratch_operands = 1 : i64, tpu.core_type = #tpu.core_type<tc>, window_params = [{transform_indices = @transform_0, window_bounds = array<i64: 1, 4, 18, 18>}, {transform_indices = @transform_1, window_bounds = array<i64: 1, 1, 18, 18>}, {transform_indices = @transform_2, window_bounds = array<i64: 1, 1, 16, 16>}, {transform_indices = @transform_3, window_bounds = array<i64: 1, 4, 16, 16>}]} {
    %c0_i32 = arith.constant 0 : i32
    %0 = arith.cmpi eq, %arg1, %c0_i32 : i32
    %1 = arith.extui %0 : i1 to i32
    %c0_i32_0 = arith.constant 0 : i32
    %2 = arith.cmpi ne, %1, %c0_i32_0 : i32
    scf.if %2 {
      %c0_28 = arith.constant 0 : index
      %c0_29 = arith.constant 0 : index
      %c0_30 = arith.constant 0 : index
      %c0_31 = arith.constant 0 : index
      %81 = vector.load %arg4[%c0_28, %c0_29, %c0_30, %c0_31] : memref<1x1x16x16xf32, #tpu.memory_space<vmem>>, vector<1x1x16x16xf32>
      %82 = vector.shape_cast %81 : vector<1x1x16x16xf32> to vector<16x16xf32>
      %cst_32 = arith.constant 0.000000e+00 : f32
      %83 = vector.broadcast %cst_32 : f32 to vector<16x16xf32>
      %c0_33 = arith.constant 0 : index
      %c0_34 = arith.constant 0 : index
      %c0_35 = arith.constant 0 : index
      %c0_36 = arith.constant 0 : index
      %84 = vector.load %arg3[%c0_33, %c0_34, %c0_35, %c0_36] : memref<1x1x18x18xf32, #tpu.memory_space<vmem>>, vector<1x1x18x18xf32>
      %85 = vector.shape_cast %84 : vector<1x1x18x18xf32> to vector<18x18xf32>
      %86 = vector.extract_strided_slice %85 {offsets = [0, 0], sizes = [18, 16], strides = [1, 1]} : vector<18x18xf32> to vector<18x16xf32>
      %87 = vector.extract_strided_slice %86 {offsets = [0, 0], sizes = [16, 16], strides = [1, 1]} : vector<18x16xf32> to vector<16x16xf32>
      %88 = arith.subf %82, %87 : vector<16x16xf32>
      %89 = math.absf %88 : vector<16x16xf32>
      %cst_37 = arith.constant -1.000000e+00 : f32
      %90 = vector.broadcast %cst_37 : f32 to vector<16x16xf32>
      %91 = arith.mulf %90, %89 : vector<16x16xf32>
      %92 = math.exp %91 : vector<16x16xf32>
      %c0_38 = arith.constant 0 : index
      %c0_39 = arith.constant 0 : index
      %c0_40 = arith.constant 0 : index
      %93 = vector.load %arg6[%c0_38, %c0_39, %c0_40] : memref<9x16x16xf32, #tpu.memory_space<vmem>>, vector<1x16x16xf32>
      %94 = vector.shape_cast %93 : vector<1x16x16xf32> to vector<16x16xf32>
      %95 = vector.shape_cast %92 : vector<16x16xf32> to vector<1x16x16xf32>
      tpu.vector_store %arg6[%c0_38, %c0_39, %c0_40], %95 {strides = array<i32>} : memref<9x16x16xf32, #tpu.memory_space<vmem>>, vector<1x16x16xf32>,
      %96 = arith.addf %83, %92 : vector<16x16xf32>
      %97 = vector.extract_strided_slice %86 {offsets = [1, 0], sizes = [16, 16], strides = [1, 1]} : vector<18x16xf32> to vector<16x16xf32>
      %98 = arith.subf %82, %97 : vector<16x16xf32>
      %99 = math.absf %98 : vector<16x16xf32>
      %cst_41 = arith.constant -1.000000e+00 : f32
      %100 = vector.broadcast %cst_41 : f32 to vector<16x16xf32>
      %101 = arith.mulf %100, %99 : vector<16x16xf32>
      %102 = math.exp %101 : vector<16x16xf32>
      %c3_42 = arith.constant 3 : index
      %c0_43 = arith.constant 0 : index
      %c0_44 = arith.constant 0 : index
      %103 = vector.load %arg6[%c3_42, %c0_43, %c0_44] : memref<9x16x16xf32, #tpu.memory_space<vmem>>, vector<1x16x16xf32>
      %104 = vector.shape_cast %103 : vector<1x16x16xf32> to vector<16x16xf32>
      %105 = vector.shape_cast %102 : vector<16x16xf32> to vector<1x16x16xf32>
      tpu.vector_store %arg6[%c3_42, %c0_43, %c0_44], %105 {strides = array<i32>} : memref<9x16x16xf32, #tpu.memory_space<vmem>>, vector<1x16x16xf32>,
      %106 = arith.addf %96, %102 : vector<16x16xf32>
      %107 = vector.extract_strided_slice %86 {offsets = [2, 0], sizes = [16, 16], strides = [1, 1]} : vector<18x16xf32> to vector<16x16xf32>
      %108 = arith.subf %82, %107 : vector<16x16xf32>
      %109 = math.absf %108 : vector<16x16xf32>
      %cst_45 = arith.constant -1.000000e+00 : f32
      %110 = vector.broadcast %cst_45 : f32 to vector<16x16xf32>
      %111 = arith.mulf %110, %109 : vector<16x16xf32>
      %112 = math.exp %111 : vector<16x16xf32>
      %c6_46 = arith.constant 6 : index
      %c0_47 = arith.constant 0 : index
      %c0_48 = arith.constant 0 : index
      %113 = vector.load %arg6[%c6_46, %c0_47, %c0_48] : memref<9x16x16xf32, #tpu.memory_space<vmem>>, vector<1x16x16xf32>
      %114 = vector.shape_cast %113 : vector<1x16x16xf32> to vector<16x16xf32>
      %115 = vector.shape_cast %112 : vector<16x16xf32> to vector<1x16x16xf32>
      tpu.vector_store %arg6[%c6_46, %c0_47, %c0_48], %115 {strides = array<i32>} : memref<9x16x16xf32, #tpu.memory_space<vmem>>, vector<1x16x16xf32>,
      %116 = arith.addf %106, %112 : vector<16x16xf32>
      %117 = vector.extract_strided_slice %85 {offsets = [0, 1], sizes = [18, 16], strides = [1, 1]} : vector<18x18xf32> to vector<18x16xf32>
      %118 = vector.extract_strided_slice %117 {offsets = [0, 0], sizes = [16, 16], strides = [1, 1]} : vector<18x16xf32> to vector<16x16xf32>
      %119 = arith.subf %82, %118 : vector<16x16xf32>
      %120 = math.absf %119 : vector<16x16xf32>
      %cst_49 = arith.constant -1.000000e+00 : f32
      %121 = vector.broadcast %cst_49 : f32 to vector<16x16xf32>
      %122 = arith.mulf %121, %120 : vector<16x16xf32>
      %123 = math.exp %122 : vector<16x16xf32>
      %c1_50 = arith.constant 1 : index
      %c0_51 = arith.constant 0 : index
      %c0_52 = arith.constant 0 : index
      %124 = vector.load %arg6[%c1_50, %c0_51, %c0_52] : memref<9x16x16xf32, #tpu.memory_space<vmem>>, vector<1x16x16xf32>
      %125 = vector.shape_cast %124 : vector<1x16x16xf32> to vector<16x16xf32>
      %126 = vector.shape_cast %123 : vector<16x16xf32> to vector<1x16x16xf32>
      tpu.vector_store %arg6[%c1_50, %c0_51, %c0_52], %126 {strides = array<i32>} : memref<9x16x16xf32, #tpu.memory_space<vmem>>, vector<1x16x16xf32>,
      %127 = arith.addf %116, %123 : vector<16x16xf32>
      %128 = vector.extract_strided_slice %117 {offsets = [1, 0], sizes = [16, 16], strides = [1, 1]} : vector<18x16xf32> to vector<16x16xf32>
      %129 = arith.subf %82, %128 : vector<16x16xf32>
      %130 = math.absf %129 : vector<16x16xf32>
      %cst_53 = arith.constant -1.000000e+00 : f32
      %131 = vector.broadcast %cst_53 : f32 to vector<16x16xf32>
      %132 = arith.mulf %131, %130 : vector<16x16xf32>
      %133 = math.exp %132 : vector<16x16xf32>
      %c4_54 = arith.constant 4 : index
      %c0_55 = arith.constant 0 : index
      %c0_56 = arith.constant 0 : index
      %134 = vector.load %arg6[%c4_54, %c0_55, %c0_56] : memref<9x16x16xf32, #tpu.memory_space<vmem>>, vector<1x16x16xf32>
      %135 = vector.shape_cast %134 : vector<1x16x16xf32> to vector<16x16xf32>
      %136 = vector.shape_cast %133 : vector<16x16xf32> to vector<1x16x16xf32>
      tpu.vector_store %arg6[%c4_54, %c0_55, %c0_56], %136 {strides = array<i32>} : memref<9x16x16xf32, #tpu.memory_space<vmem>>, vector<1x16x16xf32>,
      %137 = arith.addf %127, %133 : vector<16x16xf32>
      %138 = vector.extract_strided_slice %117 {offsets = [2, 0], sizes = [16, 16], strides = [1, 1]} : vector<18x16xf32> to vector<16x16xf32>
      %139 = arith.subf %82, %138 : vector<16x16xf32>
      %140 = math.absf %139 : vector<16x16xf32>
      %cst_57 = arith.constant -1.000000e+00 : f32
      %141 = vector.broadcast %cst_57 : f32 to vector<16x16xf32>
      %142 = arith.mulf %141, %140 : vector<16x16xf32>
      %143 = math.exp %142 : vector<16x16xf32>
      %c7_58 = arith.constant 7 : index
      %c0_59 = arith.constant 0 : index
      %c0_60 = arith.constant 0 : index
      %144 = vector.load %arg6[%c7_58, %c0_59, %c0_60] : memref<9x16x16xf32, #tpu.memory_space<vmem>>, vector<1x16x16xf32>
      %145 = vector.shape_cast %144 : vector<1x16x16xf32> to vector<16x16xf32>
      %146 = vector.shape_cast %143 : vector<16x16xf32> to vector<1x16x16xf32>
      tpu.vector_store %arg6[%c7_58, %c0_59, %c0_60], %146 {strides = array<i32>} : memref<9x16x16xf32, #tpu.memory_space<vmem>>, vector<1x16x16xf32>,
      %147 = arith.addf %137, %143 : vector<16x16xf32>
      %148 = vector.extract_strided_slice %85 {offsets = [0, 2], sizes = [18, 16], strides = [1, 1]} : vector<18x18xf32> to vector<18x16xf32>
      %149 = vector.extract_strided_slice %148 {offsets = [0, 0], sizes = [16, 16], strides = [1, 1]} : vector<18x16xf32> to vector<16x16xf32>
      %150 = arith.subf %82, %149 : vector<16x16xf32>
      %151 = math.absf %150 : vector<16x16xf32>
      %cst_61 = arith.constant -1.000000e+00 : f32
      %152 = vector.broadcast %cst_61 : f32 to vector<16x16xf32>
      %153 = arith.mulf %152, %151 : vector<16x16xf32>
      %154 = math.exp %153 : vector<16x16xf32>
      %c2_62 = arith.constant 2 : index
      %c0_63 = arith.constant 0 : index
      %c0_64 = arith.constant 0 : index
      %155 = vector.load %arg6[%c2_62, %c0_63, %c0_64] : memref<9x16x16xf32, #tpu.memory_space<vmem>>, vector<1x16x16xf32>
      %156 = vector.shape_cast %155 : vector<1x16x16xf32> to vector<16x16xf32>
      %157 = vector.shape_cast %154 : vector<16x16xf32> to vector<1x16x16xf32>
      tpu.vector_store %arg6[%c2_62, %c0_63, %c0_64], %157 {strides = array<i32>} : memref<9x16x16xf32, #tpu.memory_space<vmem>>, vector<1x16x16xf32>,
      %158 = arith.addf %147, %154 : vector<16x16xf32>
      %159 = vector.extract_strided_slice %148 {offsets = [1, 0], sizes = [16, 16], strides = [1, 1]} : vector<18x16xf32> to vector<16x16xf32>
      %160 = arith.subf %82, %159 : vector<16x16xf32>
      %161 = math.absf %160 : vector<16x16xf32>
      %cst_65 = arith.constant -1.000000e+00 : f32
      %162 = vector.broadcast %cst_65 : f32 to vector<16x16xf32>
      %163 = arith.mulf %162, %161 : vector<16x16xf32>
      %164 = math.exp %163 : vector<16x16xf32>
      %c5_66 = arith.constant 5 : index
      %c0_67 = arith.constant 0 : index
      %c0_68 = arith.constant 0 : index
      %165 = vector.load %arg6[%c5_66, %c0_67, %c0_68] : memref<9x16x16xf32, #tpu.memory_space<vmem>>, vector<1x16x16xf32>
      %166 = vector.shape_cast %165 : vector<1x16x16xf32> to vector<16x16xf32>
      %167 = vector.shape_cast %164 : vector<16x16xf32> to vector<1x16x16xf32>
      tpu.vector_store %arg6[%c5_66, %c0_67, %c0_68], %167 {strides = array<i32>} : memref<9x16x16xf32, #tpu.memory_space<vmem>>, vector<1x16x16xf32>,
      %168 = arith.addf %158, %164 : vector<16x16xf32>
      %169 = vector.extract_strided_slice %148 {offsets = [2, 0], sizes = [16, 16], strides = [1, 1]} : vector<18x16xf32> to vector<16x16xf32>
      %170 = arith.subf %82, %169 : vector<16x16xf32>
      %171 = math.absf %170 : vector<16x16xf32>
      %cst_69 = arith.constant -1.000000e+00 : f32
      %172 = vector.broadcast %cst_69 : f32 to vector<16x16xf32>
      %173 = arith.mulf %172, %171 : vector<16x16xf32>
      %174 = math.exp %173 : vector<16x16xf32>
      %c8_70 = arith.constant 8 : index
      %c0_71 = arith.constant 0 : index
      %c0_72 = arith.constant 0 : index
      %175 = vector.load %arg6[%c8_70, %c0_71, %c0_72] : memref<9x16x16xf32, #tpu.memory_space<vmem>>, vector<1x16x16xf32>
      %176 = vector.shape_cast %175 : vector<1x16x16xf32> to vector<16x16xf32>
      %177 = vector.shape_cast %174 : vector<16x16xf32> to vector<1x16x16xf32>
      tpu.vector_store %arg6[%c8_70, %c0_71, %c0_72], %177 {strides = array<i32>} : memref<9x16x16xf32, #tpu.memory_space<vmem>>, vector<1x16x16xf32>,
      %178 = arith.addf %168, %174 : vector<16x16xf32>
      %179 = tpu.reciprocal %178 {approx = true} : vector<16x16xf32> -> vector<16x16xf32>
      %180 = arith.mulf %178, %179 : vector<16x16xf32>
      %cst_73 = arith.constant 2.000000e+00 : f32
      %181 = vector.broadcast %cst_73 : f32 to vector<16x16xf32>
      %182 = arith.subf %181, %180 : vector<16x16xf32>
      %183 = arith.mulf %179, %182 : vector<16x16xf32>
      %c0_74 = arith.constant 0 : index
      %c0_75 = arith.constant 0 : index
      %c0_76 = arith.constant 0 : index
      %184 = vector.load %arg6[%c0_74, %c0_75, %c0_76] : memref<9x16x16xf32, #tpu.memory_space<vmem>>, vector<1x16x16xf32>
      %185 = vector.shape_cast %184 : vector<1x16x16xf32> to vector<16x16xf32>
      %186 = arith.mulf %185, %183 : vector<16x16xf32>
      %c0_77 = arith.constant 0 : index
      %c0_78 = arith.constant 0 : index
      %c0_79 = arith.constant 0 : index
      %187 = vector.load %arg6[%c0_77, %c0_78, %c0_79] : memref<9x16x16xf32, #tpu.memory_space<vmem>>, vector<1x16x16xf32>
      %188 = vector.shape_cast %187 : vector<1x16x16xf32> to vector<16x16xf32>
      %189 = vector.shape_cast %186 : vector<16x16xf32> to vector<1x16x16xf32>
      tpu.vector_store %arg6[%c0_77, %c0_78, %c0_79], %189 {strides = array<i32>} : memref<9x16x16xf32, #tpu.memory_space<vmem>>, vector<1x16x16xf32>,
      %c1_80 = arith.constant 1 : index
      %c0_81 = arith.constant 0 : index
      %c0_82 = arith.constant 0 : index
      %190 = vector.load %arg6[%c1_80, %c0_81, %c0_82] : memref<9x16x16xf32, #tpu.memory_space<vmem>>, vector<1x16x16xf32>
      %191 = vector.shape_cast %190 : vector<1x16x16xf32> to vector<16x16xf32>
      %192 = arith.mulf %191, %183 : vector<16x16xf32>
      %c1_83 = arith.constant 1 : index
      %c0_84 = arith.constant 0 : index
      %c0_85 = arith.constant 0 : index
      %193 = vector.load %arg6[%c1_83, %c0_84, %c0_85] : memref<9x16x16xf32, #tpu.memory_space<vmem>>, vector<1x16x16xf32>
      %194 = vector.shape_cast %193 : vector<1x16x16xf32> to vector<16x16xf32>
      %195 = vector.shape_cast %192 : vector<16x16xf32> to vector<1x16x16xf32>
      tpu.vector_store %arg6[%c1_83, %c0_84, %c0_85], %195 {strides = array<i32>} : memref<9x16x16xf32, #tpu.memory_space<vmem>>, vector<1x16x16xf32>,
      %c2_86 = arith.constant 2 : index
      %c0_87 = arith.constant 0 : index
      %c0_88 = arith.constant 0 : index
      %196 = vector.load %arg6[%c2_86, %c0_87, %c0_88] : memref<9x16x16xf32, #tpu.memory_space<vmem>>, vector<1x16x16xf32>
      %197 = vector.shape_cast %196 : vector<1x16x16xf32> to vector<16x16xf32>
      %198 = arith.mulf %197, %183 : vector<16x16xf32>
      %c2_89 = arith.constant 2 : index
      %c0_90 = arith.constant 0 : index
      %c0_91 = arith.constant 0 : index
      %199 = vector.load %arg6[%c2_89, %c0_90, %c0_91] : memref<9x16x16xf32, #tpu.memory_space<vmem>>, vector<1x16x16xf32>
      %200 = vector.shape_cast %199 : vector<1x16x16xf32> to vector<16x16xf32>
      %201 = vector.shape_cast %198 : vector<16x16xf32> to vector<1x16x16xf32>
      tpu.vector_store %arg6[%c2_89, %c0_90, %c0_91], %201 {strides = array<i32>} : memref<9x16x16xf32, #tpu.memory_space<vmem>>, vector<1x16x16xf32>,
      %c3_92 = arith.constant 3 : index
      %c0_93 = arith.constant 0 : index
      %c0_94 = arith.constant 0 : index
      %202 = vector.load %arg6[%c3_92, %c0_93, %c0_94] : memref<9x16x16xf32, #tpu.memory_space<vmem>>, vector<1x16x16xf32>
      %203 = vector.shape_cast %202 : vector<1x16x16xf32> to vector<16x16xf32>
      %204 = arith.mulf %203, %183 : vector<16x16xf32>
      %c3_95 = arith.constant 3 : index
      %c0_96 = arith.constant 0 : index
      %c0_97 = arith.constant 0 : index
      %205 = vector.load %arg6[%c3_95, %c0_96, %c0_97] : memref<9x16x16xf32, #tpu.memory_space<vmem>>, vector<1x16x16xf32>
      %206 = vector.shape_cast %205 : vector<1x16x16xf32> to vector<16x16xf32>
      %207 = vector.shape_cast %204 : vector<16x16xf32> to vector<1x16x16xf32>
      tpu.vector_store %arg6[%c3_95, %c0_96, %c0_97], %207 {strides = array<i32>} : memref<9x16x16xf32, #tpu.memory_space<vmem>>, vector<1x16x16xf32>,
      %c4_98 = arith.constant 4 : index
      %c0_99 = arith.constant 0 : index
      %c0_100 = arith.constant 0 : index
      %208 = vector.load %arg6[%c4_98, %c0_99, %c0_100] : memref<9x16x16xf32, #tpu.memory_space<vmem>>, vector<1x16x16xf32>
      %209 = vector.shape_cast %208 : vector<1x16x16xf32> to vector<16x16xf32>
      %210 = arith.mulf %209, %183 : vector<16x16xf32>
      %c4_101 = arith.constant 4 : index
      %c0_102 = arith.constant 0 : index
      %c0_103 = arith.constant 0 : index
      %211 = vector.load %arg6[%c4_101, %c0_102, %c0_103] : memref<9x16x16xf32, #tpu.memory_space<vmem>>, vector<1x16x16xf32>
      %212 = vector.shape_cast %211 : vector<1x16x16xf32> to vector<16x16xf32>
      %213 = vector.shape_cast %210 : vector<16x16xf32> to vector<1x16x16xf32>
      tpu.vector_store %arg6[%c4_101, %c0_102, %c0_103], %213 {strides = array<i32>} : memref<9x16x16xf32, #tpu.memory_space<vmem>>, vector<1x16x16xf32>,
      %c5_104 = arith.constant 5 : index
      %c0_105 = arith.constant 0 : index
      %c0_106 = arith.constant 0 : index
      %214 = vector.load %arg6[%c5_104, %c0_105, %c0_106] : memref<9x16x16xf32, #tpu.memory_space<vmem>>, vector<1x16x16xf32>
      %215 = vector.shape_cast %214 : vector<1x16x16xf32> to vector<16x16xf32>
      %216 = arith.mulf %215, %183 : vector<16x16xf32>
      %c5_107 = arith.constant 5 : index
      %c0_108 = arith.constant 0 : index
      %c0_109 = arith.constant 0 : index
      %217 = vector.load %arg6[%c5_107, %c0_108, %c0_109] : memref<9x16x16xf32, #tpu.memory_space<vmem>>, vector<1x16x16xf32>
      %218 = vector.shape_cast %217 : vector<1x16x16xf32> to vector<16x16xf32>
      %219 = vector.shape_cast %216 : vector<16x16xf32> to vector<1x16x16xf32>
      tpu.vector_store %arg6[%c5_107, %c0_108, %c0_109], %219 {strides = array<i32>} : memref<9x16x16xf32, #tpu.memory_space<vmem>>, vector<1x16x16xf32>,
      %c6_110 = arith.constant 6 : index
      %c0_111 = arith.constant 0 : index
      %c0_112 = arith.constant 0 : index
      %220 = vector.load %arg6[%c6_110, %c0_111, %c0_112] : memref<9x16x16xf32, #tpu.memory_space<vmem>>, vector<1x16x16xf32>
      %221 = vector.shape_cast %220 : vector<1x16x16xf32> to vector<16x16xf32>
      %222 = arith.mulf %221, %183 : vector<16x16xf32>
      %c6_113 = arith.constant 6 : index
      %c0_114 = arith.constant 0 : index
      %c0_115 = arith.constant 0 : index
      %223 = vector.load %arg6[%c6_113, %c0_114, %c0_115] : memref<9x16x16xf32, #tpu.memory_space<vmem>>, vector<1x16x16xf32>
      %224 = vector.shape_cast %223 : vector<1x16x16xf32> to vector<16x16xf32>
      %225 = vector.shape_cast %222 : vector<16x16xf32> to vector<1x16x16xf32>
      tpu.vector_store %arg6[%c6_113, %c0_114, %c0_115], %225 {strides = array<i32>} : memref<9x16x16xf32, #tpu.memory_space<vmem>>, vector<1x16x16xf32>,
      %c7_116 = arith.constant 7 : index
      %c0_117 = arith.constant 0 : index
      %c0_118 = arith.constant 0 : index
      %226 = vector.load %arg6[%c7_116, %c0_117, %c0_118] : memref<9x16x16xf32, #tpu.memory_space<vmem>>, vector<1x16x16xf32>
      %227 = vector.shape_cast %226 : vector<1x16x16xf32> to vector<16x16xf32>
      %228 = arith.mulf %227, %183 : vector<16x16xf32>
      %c7_119 = arith.constant 7 : index
      %c0_120 = arith.constant 0 : index
      %c0_121 = arith.constant 0 : index
      %229 = vector.load %arg6[%c7_119, %c0_120, %c0_121] : memref<9x16x16xf32, #tpu.memory_space<vmem>>, vector<1x16x16xf32>
      %230 = vector.shape_cast %229 : vector<1x16x16xf32> to vector<16x16xf32>
      %231 = vector.shape_cast %228 : vector<16x16xf32> to vector<1x16x16xf32>
      tpu.vector_store %arg6[%c7_119, %c0_120, %c0_121], %231 {strides = array<i32>} : memref<9x16x16xf32, #tpu.memory_space<vmem>>, vector<1x16x16xf32>,
      %c8_122 = arith.constant 8 : index
      %c0_123 = arith.constant 0 : index
      %c0_124 = arith.constant 0 : index
      %232 = vector.load %arg6[%c8_122, %c0_123, %c0_124] : memref<9x16x16xf32, #tpu.memory_space<vmem>>, vector<1x16x16xf32>
      %233 = vector.shape_cast %232 : vector<1x16x16xf32> to vector<16x16xf32>
      %234 = arith.mulf %233, %183 : vector<16x16xf32>
      %c8_125 = arith.constant 8 : index
      %c0_126 = arith.constant 0 : index
      %c0_127 = arith.constant 0 : index
      %235 = vector.load %arg6[%c8_125, %c0_126, %c0_127] : memref<9x16x16xf32, #tpu.memory_space<vmem>>, vector<1x16x16xf32>
      %236 = vector.shape_cast %235 : vector<1x16x16xf32> to vector<16x16xf32>
      %237 = vector.shape_cast %234 : vector<16x16xf32> to vector<1x16x16xf32>
      tpu.vector_store %arg6[%c8_125, %c0_126, %c0_127], %237 {strides = array<i32>} : memref<9x16x16xf32, #tpu.memory_space<vmem>>, vector<1x16x16xf32>,
    } else {
    }
    %c0_i32_1 = arith.constant 0 : i32
    %c1_i32 = arith.constant 1 : i32
    %3 = arith.muli %c0_i32_1, %c1_i32 : i32
    %c0_i32_2 = arith.constant 0 : i32
    %4 = arith.addi %c0_i32_2, %3 : i32
    %c4_i32 = arith.constant 4 : i32
    %5 = arith.muli %4, %c4_i32 : i32
    %6 = tpu.assume_multiple %5, 4 : i32
    %cst = arith.constant 0.000000e+00 : f32
    %7 = vector.broadcast %cst : f32 to vector<4x16x16xf32>
    %c0 = arith.constant 0 : index
    %8 = arith.index_cast %6 : i32 to index
    %c0_3 = arith.constant 0 : index
    %c0_4 = arith.constant 0 : index
    %9 = vector.load %arg2[%c0, %8, %c0_3, %c0_4] : memref<1x4x18x18xf32, #tpu.memory_space<vmem>>, vector<1x4x18x18xf32>
    %10 = vector.shape_cast %9 : vector<1x4x18x18xf32> to vector<4x18x18xf32>
    %11 = vector.extract_strided_slice %10 {offsets = [0, 0, 0], sizes = [4, 18, 16], strides = [1, 1, 1]} : vector<4x18x18xf32> to vector<4x18x16xf32>
    %12 = vector.extract_strided_slice %11 {offsets = [0, 0, 0], sizes = [4, 16, 16], strides = [1, 1, 1]} : vector<4x18x16xf32> to vector<4x16x16xf32>
    %c0_5 = arith.constant 0 : index
    %c0_6 = arith.constant 0 : index
    %c0_7 = arith.constant 0 : index
    %13 = vector.load %arg6[%c0_5, %c0_6, %c0_7] : memref<9x16x16xf32, #tpu.memory_space<vmem>>, vector<1x16x16xf32>
    %14 = vector.shape_cast %13 : vector<1x16x16xf32> to vector<16x16xf32>
    %15 = vector.shape_cast %14 : vector<16x16xf32> to vector<1x16x16xf32>
    %16 = vector.broadcast %15 : vector<1x16x16xf32> to vector<4x16x16xf32>
    %17 = arith.mulf %12, %16 : vector<4x16x16xf32>
    %18 = arith.addf %7, %17 : vector<4x16x16xf32>
    %19 = vector.extract_strided_slice %11 {offsets = [0, 1, 0], sizes = [4, 16, 16], strides = [1, 1, 1]} : vector<4x18x16xf32> to vector<4x16x16xf32>
    %c3 = arith.constant 3 : index
    %c0_8 = arith.constant 0 : index
    %c0_9 = arith.constant 0 : index
    %20 = vector.load %arg6[%c3, %c0_8, %c0_9] : memref<9x16x16xf32, #tpu.memory_space<vmem>>, vector<1x16x16xf32>
    %21 = vector.shape_cast %20 : vector<1x16x16xf32> to vector<16x16xf32>
    %22 = vector.shape_cast %21 : vector<16x16xf32> to vector<1x16x16xf32>
    %23 = vector.broadcast %22 : vector<1x16x16xf32> to vector<4x16x16xf32>
    %24 = arith.mulf %19, %23 : vector<4x16x16xf32>
    %25 = arith.addf %18, %24 : vector<4x16x16xf32>
    %26 = vector.extract_strided_slice %11 {offsets = [0, 2, 0], sizes = [4, 16, 16], strides = [1, 1, 1]} : vector<4x18x16xf32> to vector<4x16x16xf32>
    %c6 = arith.constant 6 : index
    %c0_10 = arith.constant 0 : index
    %c0_11 = arith.constant 0 : index
    %27 = vector.load %arg6[%c6, %c0_10, %c0_11] : memref<9x16x16xf32, #tpu.memory_space<vmem>>, vector<1x16x16xf32>
    %28 = vector.shape_cast %27 : vector<1x16x16xf32> to vector<16x16xf32>
    %29 = vector.shape_cast %28 : vector<16x16xf32> to vector<1x16x16xf32>
    %30 = vector.broadcast %29 : vector<1x16x16xf32> to vector<4x16x16xf32>
    %31 = arith.mulf %26, %30 : vector<4x16x16xf32>
    %32 = arith.addf %25, %31 : vector<4x16x16xf32>
    %33 = vector.extract_strided_slice %10 {offsets = [0, 0, 1], sizes = [4, 18, 16], strides = [1, 1, 1]} : vector<4x18x18xf32> to vector<4x18x16xf32>
    %34 = vector.extract_strided_slice %33 {offsets = [0, 0, 0], sizes = [4, 16, 16], strides = [1, 1, 1]} : vector<4x18x16xf32> to vector<4x16x16xf32>
    %c1 = arith.constant 1 : index
    %c0_12 = arith.constant 0 : index
    %c0_13 = arith.constant 0 : index
    %35 = vector.load %arg6[%c1, %c0_12, %c0_13] : memref<9x16x16xf32, #tpu.memory_space<vmem>>, vector<1x16x16xf32>
    %36 = vector.shape_cast %35 : vector<1x16x16xf32> to vector<16x16xf32>
    %37 = vector.shape_cast %36 : vector<16x16xf32> to vector<1x16x16xf32>
    %38 = vector.broadcast %37 : vector<1x16x16xf32> to vector<4x16x16xf32>
    %39 = arith.mulf %34, %38 : vector<4x16x16xf32>
    %40 = arith.addf %32, %39 : vector<4x16x16xf32>
    %41 = vector.extract_strided_slice %33 {offsets = [0, 1, 0], sizes = [4, 16, 16], strides = [1, 1, 1]} : vector<4x18x16xf32> to vector<4x16x16xf32>
    %c4 = arith.constant 4 : index
    %c0_14 = arith.constant 0 : index
    %c0_15 = arith.constant 0 : index
    %42 = vector.load %arg6[%c4, %c0_14, %c0_15] : memref<9x16x16xf32, #tpu.memory_space<vmem>>, vector<1x16x16xf32>
    %43 = vector.shape_cast %42 : vector<1x16x16xf32> to vector<16x16xf32>
    %44 = vector.shape_cast %43 : vector<16x16xf32> to vector<1x16x16xf32>
    %45 = vector.broadcast %44 : vector<1x16x16xf32> to vector<4x16x16xf32>
    %46 = arith.mulf %41, %45 : vector<4x16x16xf32>
    %47 = arith.addf %40, %46 : vector<4x16x16xf32>
    %48 = vector.extract_strided_slice %33 {offsets = [0, 2, 0], sizes = [4, 16, 16], strides = [1, 1, 1]} : vector<4x18x16xf32> to vector<4x16x16xf32>
    %c7 = arith.constant 7 : index
    %c0_16 = arith.constant 0 : index
    %c0_17 = arith.constant 0 : index
    %49 = vector.load %arg6[%c7, %c0_16, %c0_17] : memref<9x16x16xf32, #tpu.memory_space<vmem>>, vector<1x16x16xf32>
    %50 = vector.shape_cast %49 : vector<1x16x16xf32> to vector<16x16xf32>
    %51 = vector.shape_cast %50 : vector<16x16xf32> to vector<1x16x16xf32>
    %52 = vector.broadcast %51 : vector<1x16x16xf32> to vector<4x16x16xf32>
    %53 = arith.mulf %48, %52 : vector<4x16x16xf32>
    %54 = arith.addf %47, %53 : vector<4x16x16xf32>
    %55 = vector.extract_strided_slice %10 {offsets = [0, 0, 2], sizes = [4, 18, 16], strides = [1, 1, 1]} : vector<4x18x18xf32> to vector<4x18x16xf32>
    %56 = vector.extract_strided_slice %55 {offsets = [0, 0, 0], sizes = [4, 16, 16], strides = [1, 1, 1]} : vector<4x18x16xf32> to vector<4x16x16xf32>
    %c2 = arith.constant 2 : index
    %c0_18 = arith.constant 0 : index
    %c0_19 = arith.constant 0 : index
    %57 = vector.load %arg6[%c2, %c0_18, %c0_19] : memref<9x16x16xf32, #tpu.memory_space<vmem>>, vector<1x16x16xf32>
    %58 = vector.shape_cast %57 : vector<1x16x16xf32> to vector<16x16xf32>
    %59 = vector.shape_cast %58 : vector<16x16xf32> to vector<1x16x16xf32>
    %60 = vector.broadcast %59 : vector<1x16x16xf32> to vector<4x16x16xf32>
    %61 = arith.mulf %56, %60 : vector<4x16x16xf32>
    %62 = arith.addf %54, %61 : vector<4x16x16xf32>
    %63 = vector.extract_strided_slice %55 {offsets = [0, 1, 0], sizes = [4, 16, 16], strides = [1, 1, 1]} : vector<4x18x16xf32> to vector<4x16x16xf32>
    %c5 = arith.constant 5 : index
    %c0_20 = arith.constant 0 : index
    %c0_21 = arith.constant 0 : index
    %64 = vector.load %arg6[%c5, %c0_20, %c0_21] : memref<9x16x16xf32, #tpu.memory_space<vmem>>, vector<1x16x16xf32>
    %65 = vector.shape_cast %64 : vector<1x16x16xf32> to vector<16x16xf32>
    %66 = vector.shape_cast %65 : vector<16x16xf32> to vector<1x16x16xf32>
    %67 = vector.broadcast %66 : vector<1x16x16xf32> to vector<4x16x16xf32>
    %68 = arith.mulf %63, %67 : vector<4x16x16xf32>
    %69 = arith.addf %62, %68 : vector<4x16x16xf32>
    %70 = vector.extract_strided_slice %55 {offsets = [0, 2, 0], sizes = [4, 16, 16], strides = [1, 1, 1]} : vector<4x18x16xf32> to vector<4x16x16xf32>
    %c8 = arith.constant 8 : index
    %c0_22 = arith.constant 0 : index
    %c0_23 = arith.constant 0 : index
    %71 = vector.load %arg6[%c8, %c0_22, %c0_23] : memref<9x16x16xf32, #tpu.memory_space<vmem>>, vector<1x16x16xf32>
    %72 = vector.shape_cast %71 : vector<1x16x16xf32> to vector<16x16xf32>
    %73 = vector.shape_cast %72 : vector<16x16xf32> to vector<1x16x16xf32>
    %74 = vector.broadcast %73 : vector<1x16x16xf32> to vector<4x16x16xf32>
    %75 = arith.mulf %70, %74 : vector<4x16x16xf32>
    %76 = arith.addf %69, %75 : vector<4x16x16xf32>
    %c0_24 = arith.constant 0 : index
    %77 = arith.index_cast %6 : i32 to index
    %c0_25 = arith.constant 0 : index
    %c0_26 = arith.constant 0 : index
    %78 = vector.load %arg5[%c0_24, %77, %c0_25, %c0_26] : memref<1x4x16x16xf32, #tpu.memory_space<vmem>>, vector<1x4x16x16xf32>
    %79 = vector.shape_cast %78 : vector<1x4x16x16xf32> to vector<4x16x16xf32>
    %80 = vector.shape_cast %76 : vector<4x16x16xf32> to vector<1x4x16x16xf32>
    tpu.vector_store %arg5[%c0_24, %77, %c0_25, %c0_26], %80 {strides = array<i32>} : memref<1x4x16x16xf32, #tpu.memory_space<vmem>>, vector<1x4x16x16xf32>,
    %c1_i32_27 = arith.constant 1 : i32
    return
  }
  func.func @transform_0(%arg0: i32, %arg1: i32) -> (i32, i32, i32, i32) {
    %c0_i32 = arith.constant 0 : i32
    %c0_i32_0 = arith.constant 0 : i32
    %c0_i32_1 = arith.constant 0 : i32
    return %arg0, %arg1, %c0_i32, %c0_i32_0 : i32, i32, i32, i32
  }
  func.func @transform_1(%arg0: i32, %arg1: i32) -> (i32, i32, i32, i32) {
    %c0_i32 = arith.constant 0 : i32
    %c0_i32_0 = arith.constant 0 : i32
    %c0_i32_1 = arith.constant 0 : i32
    %c0_i32_2 = arith.constant 0 : i32
    return %arg0, %c0_i32, %c0_i32_0, %c0_i32_1 : i32, i32, i32, i32
  }
  func.func @transform_2(%arg0: i32, %arg1: i32) -> (i32, i32, i32, i32) {
    %c0_i32 = arith.constant 0 : i32
    %c0_i32_0 = arith.constant 0 : i32
    %c0_i32_1 = arith.constant 0 : i32
    %c0_i32_2 = arith.constant 0 : i32
    return %arg0, %c0_i32, %c0_i32_0, %c0_i32_1 : i32, i32, i32, i32
  }
  func.func @transform_3(%arg0: i32, %arg1: i32) -> (i32, i32, i32, i32) {
    %c0_i32 = arith.constant 0 : i32
    %c0_i32_0 = arith.constant 0 : i32
    %c0_i32_1 = arith.constant 0 : i32
    return %arg0, %arg1, %c0_i32, %c0_i32_0 : i32, i32, i32, i32
  }
}

</mosaic_0001>

<llo_original>
// kernel: tpu_custom_call.1
$region0: #{tpu_custom_call.1}
  #allocation0 [shape = 'u32[]', space=smem, size = 0x4, offset = 0x4, fixed_abs, tag = 'smem constant byte address 0x4 - core index']
  #allocation1 [shape = 'u32[144,128]{1,0:T(1,128)}', space=vmem, size = 0x12000, scoped, tag = 'internal scratch']
  #allocation2 [shape = 'f32[9,16,16]{2,1,0:T(8,128)}', space=vmem, size = 0x12000, scoped, tag = 'scratch operand']
  %s0 = inlined_call_operand.vmem [shape: f32[2,4,18,18], index: 0, kind: input, shape index: {}]
  %s1 = inlined_call_operand.vmem [shape: f32[2,1,18,18], index: 1, kind: input, shape index: {}]
  %s2 = inlined_call_operand.vmem [shape: f32[2,1,16,16], index: 2, kind: input, shape index: {}]
  %s3 = inlined_call_operand.hbm [shape: f32[2,4,16,16], index: 3, kind: output, shape index: {}]
  %s4 = sld [smem:[#allocation0]]
  $region49: #{tpu_custom_call.1} parent=0
    _
  %s6 = ssub.s32 1, %s4
  %s7 = scalar_select 0, %s6, %s4
  $region1: #{tpu_custom_call.1} parent=0
    #allocation3 [shape = 'u8[65536]{0}', space=vmem, size = 0x10000, scoped, tag = 'output window, operand 0']
    #allocation4 [shape = 's32[2]{0}', space=sflag, size = 0x8, scoped, tag = 'scoped memory for tpu_custom_call.1']
    %8 = vsyncpa [#allocation4], 0
    %s9 = scalar_lea.sflag [#allocation4], 1
    %10 = vsyncpa %s9, 0
    loop: start=0, step=1, limit=4
    $region2: #{tpu_custom_call.1} parent=1 // loop_pre_header
      _
    $region3: #{tpu_custom_call.1} parent=1 // loop_header
      %s12 = sphi 0, %s16
      %p13 = scmp.ge.s32.totalorder %s12, 4
      %s19 = sphi 0, %s31
      %s20 = sphi 0, %s27
      %s21 = sphi 0, %s19
      %s22 = sphi 0, %s20
      %s23 = sphi 0, %s21
      %s24 = sphi 0, %s22
      %s36 = sphi 0, %s38
      %s39 = sphi 0, %s36
      %s40 = sphi 0, %s39
      %s56 = sphi 0, %s40
      %s62 = sphi 0, %s64
      %s65 = sphi 0, %s62
      %s66 = sphi 0, %s65
      %s82 = sphi 0, %s66
      %s88 = sphi 0, %s90
      %s91 = sphi 0, %s88
      %s92 = sphi 0, %s91
      %s108 = sphi 0, %s92
      %s116 = sphi 0, %s118
      %s119 = sphi 0, %s116
      %s120 = sphi 0, %s119
      %s136 = sphi 0, %s120
    $region4: #{tpu_custom_call.1} parent=1 // loop_header_branch
      %15 = sbr.rel (%p13) target = $region8
    $region5: #{tpu_custom_call.1} parent=1 // loop_body
      %s17 = ssub.s32 %s12, 1
      %s18 = ssub.s32 %s12, 2
      %s25 = sadd.s32 1, %s20
      %p26 = scmp.ge.s32.totalorder %s25, 1
      %s27 = scalar_select %p26, 0, %s25
      %s28 = sadd.s32 1, %s19
      %s29 = scalar_select %p26, %s28, %s19
      %p30 = scmp.ge.s32.totalorder %s29, 2
      %s31 = scalar_select %p30, 0, %s29
      %s32 = ssub.s32 %s19, %s31
      %s33 = ssub.s32 %s20, %s27
      %s34 = sor.u32 %s32, %s33
      %p35 = scmp.eq.s32.totalorder %s34, 0
      %s37 = sadd.s32 %s36, 1
      %s38 = scalar_select %p35, %s36, %s37
      %p41 = pneg %p35
      %p42 = scmp.eq.s32.totalorder %s12, 1
      %p43 = por %p41, %p42
      %p44 = scmp.ne.s32.totalorder %s36, %s39
      %p45 = scmp.eq.s32.totalorder %s12, 0
      %p46 = por %p44, %p45
      %p47 = scmp.ne.s32.totalorder %s36, %s39
      %p48 = scmp.eq.s32.totalorder %s17, 1
      %p49 = por %p47, %p48
      %p50 = scmp.ne.s32.totalorder %s39, %s40
      %p51 = scmp.eq.s32.totalorder %s17, 0
      %p52 = por %p50, %p51
      %p53 = scmp.ne.s32.totalorder %s39, %s40
      %p54 = scmp.eq.s32.totalorder %s18, 1
      %p55 = por %p53, %p54
      %p57 = scmp.ne.s32.totalorder %s40, %s56
      %p58 = scmp.eq.s32.totalorder %s18, 0
      %p59 = por %p57, %p58
      %s60 = ssub.s32 %s19, %s31
      %p61 = scmp.eq.s32.totalorder %s60, 0
      %s63 = sadd.s32 %s62, 1
      %s64 = scalar_select %p61, %s62, %s63
      %p67 = pneg %p61
      %p68 = scmp.eq.s32.totalorder %s12, 1
      %p69 = por %p67, %p68
      %p70 = scmp.ne.s32.totalorder %s62, %s65
      %p71 = scmp.eq.s32.totalorder %s12, 0
      %p72 = por %p70, %p71
      %p73 = scmp.ne.s32.totalorder %s62, %s65
      %p74 = scmp.eq.s32.totalorder %s17, 1
      %p75 = por %p73, %p74
      %p76 = scmp.ne.s32.totalorder %s65, %s66
      %p77 = scmp.eq.s32.totalorder %s17, 0
      %p78 = por %p76, %p77
      %p79 = scmp.ne.s32.totalorder %s65, %s66
      %p80 = scmp.eq.s32.totalorder %s18, 1
      %p81 = por %p79, %p80
      %p83 = scmp.ne.s32.totalorder %s66, %s82
      %p84 = scmp.eq.s32.totalorder %s18, 0
      %p85 = por %p83, %p84
      %s86 = ssub.s32 %s19, %s31
      %p87 = scmp.eq.s32.totalorder %s86, 0
      %s89 = sadd.s32 %s88, 1
      %s90 = scalar_select %p87, %s88, %s89
      %p93 = pneg %p87
      %p94 = scmp.eq.s32.totalorder %s12, 1
      %p95 = por %p93, %p94
      %p96 = scmp.ne.s32.totalorder %s88, %s91
      %p97 = scmp.eq.s32.totalorder %s12, 0
      %p98 = por %p96, %p97
      %p99 = scmp.ne.s32.totalorder %s88, %s91
      %p100 = scmp.eq.s32.totalorder %s17, 1
      %p101 = por %p99, %p100
      %p102 = scmp.ne.s32.totalorder %s91, %s92
      %p103 = scmp.eq.s32.totalorder %s17, 0
      %p104 = por %p102, %p103
      %p105 = scmp.ne.s32.totalorder %s91, %s92
      %p106 = scmp.eq.s32.totalorder %s18, 1
      %p107 = por %p105, %p106
      %p109 = scmp.ne.s32.totalorder %s92, %s108
      %p110 = scmp.eq.s32.totalorder %s18, 0
      %p111 = por %p109, %p110
      %s112 = ssub.s32 %s19, %s31
      %s113 = ssub.s32 %s20, %s27
      %s114 = sor.u32 %s112, %s113
      %p115 = scmp.eq.s32.totalorder %s114, 0
      %s117 = sadd.s32 %s116, 1
      %s118 = scalar_select %p115, %s116, %s117
      %p121 = pneg %p115
      %p122 = scmp.eq.s32.totalorder %s12, 1
      %p123 = por %p121, %p122
      %p124 = scmp.ne.s32.totalorder %s116, %s119
      %p125 = scmp.eq.s32.totalorder %s12, 0
      %p126 = por %p124, %p125
      %p127 = scmp.ne.s32.totalorder %s116, %s119
      %p128 = scmp.eq.s32.totalorder %s17, 1
      %p129 = por %p127, %p128
      %p130 = scmp.ne.s32.totalorder %s119, %s120
      %p131 = scmp.eq.s32.totalorder %s17, 0
      %p132 = por %p130, %p131
      %p133 = scmp.ne.s32.totalorder %s119, %s120
      %p134 = scmp.eq.s32.totalorder %s18, 1
      %p135 = por %p133, %p134
      %p137 = scmp.ne.s32.totalorder %s120, %s136
      %p138 = scmp.eq.s32.totalorder %s18, 0
      %p139 = por %p137, %p138
      %p140 = scmp.le.s32.totalorder 1, %s12
      %p141 = scmp.lt.s32.totalorder %s12, 3
      %p142 = pnand %p140, %p141
      %p143 = pneg %p142
      // Predicated region
      $region9: #{tpu_custom_call.1} parent=5 // pred_check
        _
      $region10: #{tpu_custom_call.1} parent=5 // pred_check_branch
        %145 = sbr.rel (%p142) target = $region12
      $region11: #{tpu_custom_call.1} parent=5 // pred_region
        %s146 = ssub.s32 %s12, 1
      $region12: #{tpu_custom_call.1} parent=5 // pred_fallthru
        _
      %p147 = scmp.lt.s32.totalorder %s12, 2
      // Predicated region
      $region13: #{tpu_custom_call.1} parent=5 // pred_check
        %p148 = pneg %p147
      $region14: #{tpu_custom_call.1} parent=5 // pred_check_branch
        %150 = sbr.rel (%p148) target = $region16
      $region15: #{tpu_custom_call.1} parent=5 // pred_region
        // Predicated region
        $region17: #{tpu_custom_call.1} parent=15 // pred_check
          %p151 = pneg %p46
        $region18: #{tpu_custom_call.1} parent=15 // pred_check_branch
          %153 = sbr.rel (%p151) target = $region20
        $region19: #{tpu_custom_call.1} parent=15 // pred_region
          %s154 = smul.u32 4, %s20
          %p155 = scmp.lt.s32.totalorder %s19, 1
          %s156 = scalar_select %p155, %s19, 1
          %p157 = scmp.lt.s32.totalorder %s154, 3
          %s158 = scalar_select %p157, %s154, 3
          %s159 = smul.addr %s158, 3
          %s160 = smul.addr %s156, 12
          %s161 = sadd.s32 %s159, %s160
          %s162 = smul.addr %s161, 8
          %s163 = scalar_lea.vmem %s0, %s162
          %s164 = smul.u32 4, %s20
        $region20: #{tpu_custom_call.1} parent=15 // pred_fallthru
          _
        // Predicated region
        $region21: #{tpu_custom_call.1} parent=15 // pred_check
          %p165 = pneg %p72
        $region22: #{tpu_custom_call.1} parent=15 // pred_check_branch
          %167 = sbr.rel (%p165) target = $region24
        $region23: #{tpu_custom_call.1} parent=15 // pred_region
          %p168 = scmp.lt.s32.totalorder %s19, 1
          %s169 = scalar_select %p168, %s19, 1
          %s170 = smul.addr %s169, 3
          %s171 = smul.addr %s170, 8
          %s172 = scalar_lea.vmem %s1, %s171
        $region24: #{tpu_custom_call.1} parent=15 // pred_fallthru
          _
        // Predicated region
        $region25: #{tpu_custom_call.1} parent=15 // pred_check
          %p173 = pneg %p98
        $region26: #{tpu_custom_call.1} parent=15 // pred_check_branch
          %175 = sbr.rel (%p173) target = $region28
        $region27: #{tpu_custom_call.1} parent=15 // pred_region
          %p176 = scmp.lt.s32.totalorder %s19, 1
          %s177 = scalar_select %p176, %s19, 1
          %s178 = smul.addr %s177, 2
          %s179 = smul.addr %s178, 8
          %s180 = scalar_lea.vmem %s2, %s179
        $region28: #{tpu_custom_call.1} parent=15 // pred_fallthru
          _
      $region16: #{tpu_custom_call.1} parent=5 // pred_fallthru
        _
      %p181 = scmp.le.s32.totalorder 1, %s12
      %p182 = scmp.lt.s32.totalorder %s12, 3
      %p183 = pnand %p181, %p182
      %p184 = pneg %p183
      // Predicated region
      $region29: #{tpu_custom_call.1} parent=5 // pred_check
        _
      $region30: #{tpu_custom_call.1} parent=5 // pred_check_branch
        %186 = sbr.rel (%p183) target = $region32
      $region31: #{tpu_custom_call.1} parent=5 // pred_region
        %s187 = ssub.s32 %s12, 1
        %s188 = smul.u32 4, %s22
        %p189 = scmp.lt.s32.totalorder %s21, 1
        %s190 = scalar_select %p189, %s21, 1
        %p191 = scmp.lt.s32.totalorder %s188, 3
        %s192 = scalar_select %p191, %s188, 3
        %s193 = smul.addr %s192, 3
        %s194 = smul.addr %s190, 12
        %s195 = sadd.s32 %s193, %s194
        %s196 = smul.addr %s195, 8
        %s197 = scalar_lea.vmem %s0, %s196
        %p198 = pneg %p52
        %p199 = pneg %p49
        %p200 = scmp.lt.s32.totalorder %s21, 1
        %s201 = scalar_select %p200, %s21, 1
        %s202 = smul.addr %s201, 3
        %s203 = smul.addr %s202, 8
        %s204 = scalar_lea.vmem %s1, %s203
        %p205 = pneg %p78
        %p206 = pneg %p75
        %p207 = scmp.lt.s32.totalorder %s21, 1
        %s208 = scalar_select %p207, %s21, 1
        %s209 = smul.addr %s208, 2
        %s210 = smul.addr %s209, 8
        %s211 = scalar_lea.vmem %s2, %s210
        %p212 = pneg %p104
        %p213 = pneg %p101
        %p214 = pneg %p132
        %p215 = pneg %p129
        %s216 = sand.u32 %s119, 1
        %s217 = scalar_lea.sflag [#allocation4], %s216
        %s218 = sand.u32 %s119, 1
        %s219 = smul.addr %s218, 64
        %s220 = scalar_lea.vmem [#allocation3], %s219
        %s221 = smul.u32 4, %s22
        %p222 = scmp.lt.s32.totalorder %s21, 1
        %s223 = scalar_select %p222, %s21, 1
        %p224 = scmp.lt.s32.totalorder %s221, 3
        %s225 = scalar_select %p224, %s221, 3
        %s226 = smul.addr %s225, 3
        %s227 = smul.addr %s223, 12
        %s228 = sadd.s32 %s226, %s227
        %s229 = smul.addr %s228, 8
        %s230 = scalar_lea.vmem %s0, %s229
        %s231 = smul.u32 4, %s22
        %p232 = scmp.lt.s32.totalorder %s21, 1
        %s233 = scalar_select %p232, %s21, 1
        %s234 = smul.addr %s233, 3
        %s235 = smul.addr %s234, 8
        %s236 = scalar_lea.vmem %s1, %s235
        %p237 = scmp.lt.s32.totalorder %s21, 1
        %s238 = scalar_select %p237, %s21, 1
        %s239 = smul.addr %s238, 2
        %s240 = smul.addr %s239, 8
        %s241 = scalar_lea.vmem %s2, %s240
        %s242 = smul.u32 4, %s22
        %p243 = scmp.eq.s32.totalorder %s22, 0
        // Predicated region
        $region33: #{tpu_custom_call.1} parent=31 // pred_check
          %p244 = pneg %p243
        $region34: #{tpu_custom_call.1} parent=31 // pred_check_branch
          %246 = sbr.rel (%p244) target = $region36
        $region35: #{tpu_custom_call.1} parent=31 // pred_region
          %v247 = vld [vmem:[%s241] sm:$0xff]
          %v248 = vld [vmem:[%s241 + $0x8] sm:$0xff]
          %v249 = vld [vmem:[%s236] sm:$0xff]
          %v250 = vld [vmem:[%s236 + $0x8] sm:$0xff]
          %v251 = vld [vmem:[%s236 + $0x10] sm:$0x3]
          %v252 = vsub.f32 %v247, %v249
          %v253 = vsub.f32 %v248, %v250
          %v254 = vand.u32 2147483647, %v252
          %v255 = vand.u32 2147483647, %v253
          %v256 = vmul.f32 %v254, -1.0
          %v257 = vmul.f32 %v255, -1.0
          %v258 = vmul.f32 %v256, 1.442695
          %v259 = vpow.pop %v258
          %v260 = vmul.f32 %v257, 1.442695
          %v261 = vpow.pop %v260
          %vm262 = vcmask 130048
          %263 = vst.msk [vmem:[#allocation2] sm:$0xff] %vm262, %v259
          %264 = vst.msk [vmem:[#allocation2 + $0x8] sm:$0xff] %vm262, %v261
          %v265 = vadd.f32 %v259, 0.0
          %v266 = vadd.f32 %v261, 0.0
          %vm270 = vcmask 1046528
          %v271 = vrot.slane %v249, 1
          %v272 = vrot.slane %v250, 1
          %v273 = vsel %vm270, %v271, %v272
          %v274 = vrot.slane %v251, 1
          %v275 = vsel %vm270, %v272, %v274
          %v278 = vsub.f32 %v247, %v273
          %v279 = vsub.f32 %v248, %v275
          %v280 = vand.u32 2147483647, %v278
          %v281 = vand.u32 2147483647, %v279
          %v282 = vmul.f32 %v280, -1.0
          %v283 = vmul.f32 %v281, -1.0
          %v284 = vmul.f32 %v282, 1.442695
          %v285 = vpow.pop %v284
          %v286 = vmul.f32 %v283, 1.442695
          %v287 = vpow.pop %v286
          %s288 = scalar_lea.vmem [#allocation2], 48
          %289 = vst.msk [vmem:[%s288] sm:$0xff] %vm262, %v285
          %290 = vst.msk [vmem:[%s288 + $0x8] sm:$0xff] %vm262, %v287
          %v291 = vadd.f32 %v265, %v285
          %v292 = vadd.f32 %v266, %v287
          %vm293 = vcmask 1045504
          %v294 = vrot.slane %v249, 2
          %v295 = vrot.slane %v250, 2
          %v296 = vsel %vm293, %v294, %v295
          %v297 = vrot.slane %v251, 2
          %v298 = vsel %vm293, %v295, %v297
          %v301 = vsub.f32 %v247, %v296
          %v302 = vsub.f32 %v248, %v298
          %v303 = vand.u32 2147483647, %v301
          %v304 = vand.u32 2147483647, %v302
          %v305 = vmul.f32 %v303, -1.0
          %v306 = vmul.f32 %v304, -1.0
          %v307 = vmul.f32 %v305, 1.442695
          %v308 = vpow.pop %v307
          %v309 = vmul.f32 %v306, 1.442695
          %v310 = vpow.pop %v309
          %s311 = scalar_lea.vmem [#allocation2], 96
          %312 = vst.msk [vmem:[%s311] sm:$0xff] %vm262, %v308
          %313 = vst.msk [vmem:[%s311 + $0x8] sm:$0xff] %vm262, %v310
          %v314 = vadd.f32 %v291, %v308
          %v315 = vadd.f32 %v292, %v310
          %316 = vrot.lane.b32.xlu0 %v249, 127
          %v317 = vpop.permute.xlu0 %316
          %318 = vrot.lane.b32.xlu0 %v250, 127
          %v319 = vpop.permute.xlu0 %318
          %v322 = vsub.f32 %v247, %v317
          %v323 = vsub.f32 %v248, %v319
          %v324 = vand.u32 2147483647, %v322
          %v325 = vand.u32 2147483647, %v323
          %v326 = vmul.f32 %v324, -1.0
          %v327 = vmul.f32 %v325, -1.0
          %v328 = vmul.f32 %v326, 1.442695
          %v329 = vpow.pop %v328
          %v330 = vmul.f32 %v327, 1.442695
          %v331 = vpow.pop %v330
          %s332 = scalar_lea.vmem [#allocation2], 16
          %333 = vst.msk [vmem:[%s332] sm:$0xff] %vm262, %v329
          %334 = vst.msk [vmem:[%s332 + $0x8] sm:$0xff] %vm262, %v331
          %v335 = vadd.f32 %v314, %v329
          %v336 = vadd.f32 %v315, %v331
          %337 = vrot.lane.b32.xlu0 %v273, 127
          %v338 = vpop.permute.xlu0 %337
          %339 = vrot.lane.b32.xlu0 %v275, 127
          %v340 = vpop.permute.xlu0 %339
          %v343 = vsub.f32 %v247, %v338
          %v344 = vsub.f32 %v248, %v340
          %v345 = vand.u32 2147483647, %v343
          %v346 = vand.u32 2147483647, %v344
          %v347 = vmul.f32 %v345, -1.0
          %v348 = vmul.f32 %v346, -1.0
          %v349 = vmul.f32 %v347, 1.442695
          %v350 = vpow.pop %v349
          %v351 = vmul.f32 %v348, 1.442695
          %v352 = vpow.pop %v351
          %s353 = scalar_lea.vmem [#allocation2], 64
          %354 = vst.msk [vmem:[%s353] sm:$0xff] %vm262, %v350
          %355 = vst.msk [vmem:[%s353 + $0x8] sm:$0xff] %vm262, %v352
          %v356 = vadd.f32 %v335, %v350
          %v357 = vadd.f32 %v336, %v352
          %358 = vrot.lane.b32.xlu0 %v296, 127
          %v359 = vpop.permute.xlu0 %358
          %360 = vrot.lane.b32.xlu0 %v298, 127
          %v361 = vpop.permute.xlu0 %360
          %v364 = vsub.f32 %v247, %v359
          %v365 = vsub.f32 %v248, %v361
          %v366 = vand.u32 2147483647, %v364
          %v367 = vand.u32 2147483647, %v365
          %v368 = vmul.f32 %v366, -1.0
          %v369 = vmul.f32 %v367, -1.0
          %v370 = vmul.f32 %v368, 1.442695
          %v371 = vpow.pop %v370
          %v372 = vmul.f32 %v369, 1.442695
          %v373 = vpow.pop %v372
          %s374 = scalar_lea.vmem [#allocation2], 112
          %375 = vst.msk [vmem:[%s374] sm:$0xff] %vm262, %v371
          %376 = vst.msk [vmem:[%s374 + $0x8] sm:$0xff] %vm262, %v373
          %v377 = vadd.f32 %v356, %v371
          %v378 = vadd.f32 %v357, %v373
          %379 = vrot.lane.b32.xlu0 %v249, 126
          %v380 = vpop.permute.xlu0 %379
          %381 = vrot.lane.b32.xlu0 %v250, 126
          %v382 = vpop.permute.xlu0 %381
          %v385 = vsub.f32 %v247, %v380
          %v386 = vsub.f32 %v248, %v382
          %v387 = vand.u32 2147483647, %v385
          %v388 = vand.u32 2147483647, %v386
          %v389 = vmul.f32 %v387, -1.0
          %v390 = vmul.f32 %v388, -1.0
          %v391 = vmul.f32 %v389, 1.442695
          %v392 = vpow.pop %v391
          %v393 = vmul.f32 %v390, 1.442695
          %v394 = vpow.pop %v393
          %s395 = scalar_lea.vmem [#allocation2], 32
          %396 = vst.msk [vmem:[%s395] sm:$0xff] %vm262, %v392
          %397 = vst.msk [vmem:[%s395 + $0x8] sm:$0xff] %vm262, %v394
          %v398 = vadd.f32 %v377, %v392
          %v399 = vadd.f32 %v378, %v394
          %400 = vrot.lane.b32.xlu0 %v273, 126
          %v401 = vpop.permute.xlu0 %400
          %402 = vrot.lane.b32.xlu0 %v275, 126
          %v403 = vpop.permute.xlu0 %402
          %v406 = vsub.f32 %v247, %v401
          %v407 = vsub.f32 %v248, %v403
          %v408 = vand.u32 2147483647, %v406
          %v409 = vand.u32 2147483647, %v407
          %v410 = vmul.f32 %v408, -1.0
          %v411 = vmul.f32 %v409, -1.0
          %v412 = vmul.f32 %v410, 1.442695
          %v413 = vpow.pop %v412
          %v414 = vmul.f32 %v411, 1.442695
          %v415 = vpow.pop %v414
          %s416 = scalar_lea.vmem [#allocation2], 80
          %417 = vst.msk [vmem:[%s416] sm:$0xff] %vm262, %v413
          %418 = vst.msk [vmem:[%s416 + $0x8] sm:$0xff] %vm262, %v415
          %v419 = vadd.f32 %v398, %v413
          %v420 = vadd.f32 %v399, %v415
          %421 = vrot.lane.b32.xlu0 %v296, 126
          %v422 = vpop.permute.xlu0 %421
          %423 = vrot.lane.b32.xlu0 %v298, 126
          %v424 = vpop.permute.xlu0 %423
          %v427 = vsub.f32 %v247, %v422
          %v428 = vsub.f32 %v248, %v424
          %v429 = vand.u32 2147483647, %v427
          %v430 = vand.u32 2147483647, %v428
          %v431 = vmul.f32 %v429, -1.0
          %v432 = vmul.f32 %v430, -1.0
          %v433 = vmul.f32 %v431, 1.442695
          %v434 = vpow.pop %v433
          %v435 = vmul.f32 %v432, 1.442695
          %v436 = vpow.pop %v435
          %s437 = scalar_lea.vmem [#allocation2], 128
          %438 = vst.msk [vmem:[%s437] sm:$0xff] %vm262, %v434
          %439 = vst.msk [vmem:[%s437 + $0x8] sm:$0xff] %vm262, %v436
          %v440 = vadd.f32 %v419, %v434
          %v441 = vadd.f32 %v420, %v436
          %v442 = vrcp.pop %v440
          %v443 = vrcp.pop %v441
          %v444 = vmul.f32 %v440, %v442
          %v445 = vmul.f32 %v441, %v443
          %v446 = vsub.f32 2.0, %v444
          %v447 = vsub.f32 2.0, %v445
          %v448 = vmul.f32 %v442, %v446
          %v449 = vmul.f32 %v443, %v447
          %v450 = vld [vmem:[#allocation2] sm:$0xff]
          %v451 = vld [vmem:[#allocation2 + $0x8] sm:$0xff]
          %v452 = vmul.f32 %v450, %v448
          %v453 = vmul.f32 %v451, %v449
          %454 = vst.msk [vmem:[#allocation2] sm:$0xff] %vm262, %v452
          %455 = vst.msk [vmem:[#allocation2 + $0x8] sm:$0xff] %vm262, %v453
          %v456 = vld [vmem:[%s332] sm:$0xff]
          %v457 = vld [vmem:[%s332 + $0x8] sm:$0xff]
          %v458 = vmul.f32 %v456, %v448
          %v459 = vmul.f32 %v457, %v449
          %460 = vst.msk [vmem:[%s332] sm:$0xff] %vm262, %v458
          %461 = vst.msk [vmem:[%s332 + $0x8] sm:$0xff] %vm262, %v459
          %v462 = vld [vmem:[%s395] sm:$0xff]
          %v463 = vld [vmem:[%s395 + $0x8] sm:$0xff]
          %v464 = vmul.f32 %v462, %v448
          %v465 = vmul.f32 %v463, %v449
          %466 = vst.msk [vmem:[%s395] sm:$0xff] %vm262, %v464
          %467 = vst.msk [vmem:[%s395 + $0x8] sm:$0xff] %vm262, %v465
          %v468 = vld [vmem:[%s288] sm:$0xff]
          %v469 = vld [vmem:[%s288 + $0x8] sm:$0xff]
          %v470 = vmul.f32 %v468, %v448
          %v471 = vmul.f32 %v469, %v449
          %472 = vst.msk [vmem:[%s288] sm:$0xff] %vm262, %v470
          %473 = vst.msk [vmem:[%s288 + $0x8] sm:$0xff] %vm262, %v471
          %v474 = vld [vmem:[%s353] sm:$0xff]
          %v475 = vld [vmem:[%s353 + $0x8] sm:$0xff]
          %v476 = vmul.f32 %v474, %v448
          %v477 = vmul.f32 %v475, %v449
          %478 = vst.msk [vmem:[%s353] sm:$0xff] %vm262, %v476
          %479 = vst.msk [vmem:[%s353 + $0x8] sm:$0xff] %vm262, %v477
          %v480 = vld [vmem:[%s416] sm:$0xff]
          %v481 = vld [vmem:[%s416 + $0x8] sm:$0xff]
          %v482 = vmul.f32 %v480, %v448
          %v483 = vmul.f32 %v481, %v449
          %484 = vst.msk [vmem:[%s416] sm:$0xff] %vm262, %v482
          %485 = vst.msk [vmem:[%s416 + $0x8] sm:$0xff] %vm262, %v483
          %v486 = vld [vmem:[%s311] sm:$0xff]
          %v487 = vld [vmem:[%s311 + $0x8] sm:$0xff]
          %v488 = vmul.f32 %v486, %v448
          %v489 = vmul.f32 %v487, %v449
          %490 = vst.msk [vmem:[%s311] sm:$0xff] %vm262, %v488
          %491 = vst.msk [vmem:[%s311 + $0x8] sm:$0xff] %vm262, %v489
          %v492 = vld [vmem:[%s374] sm:$0xff]
          %v493 = vld [vmem:[%s374 + $0x8] sm:$0xff]
          %v494 = vmul.f32 %v492, %v448
          %v495 = vmul.f32 %v493, %v449
          %496 = vst.msk [vmem:[%s374] sm:$0xff] %vm262, %v494
          %497 = vst.msk [vmem:[%s374 + $0x8] sm:$0xff] %vm262, %v495
          %v498 = vld [vmem:[%s437] sm:$0xff]
          %v499 = vld [vmem:[%s437 + $0x8] sm:$0xff]
          %v500 = vmul.f32 %v498, %v448
          %v501 = vmul.f32 %v499, %v449
          %502 = vst.msk [vmem:[%s437] sm:$0xff] %vm262, %v500
          %503 = vst.msk [vmem:[%s437 + $0x8] sm:$0xff] %vm262, %v501
        $region36: #{tpu_custom_call.1} parent=31 // pred_fallthru
          _
        %s504 = smul.u32 0, 24
        %s505 = scalar_lea.vmem %s230, %s504
        %v506 = vld [vmem:[%s505] sm:$0xff]
        %v507 = vld [vmem:[%s505 + $0x8] sm:$0xff]
        %v508 = vld [vmem:[%s505 + $0x10] sm:$0x3]
        %v509 = vld [vmem:[%s505 + $0x18] sm:$0xff]
        %v510 = vld [vmem:[%s505 + $0x20] sm:$0xff]
        %v511 = vld [vmem:[%s505 + $0x28] sm:$0x3]
        %v512 = vld [vmem:[%s505 + $0x30] sm:$0xff]
        %v513 = vld [vmem:[%s505 + $0x38] sm:$0xff]
        %v514 = vld [vmem:[%s505 + $0x40] sm:$0x3]
        %v515 = vld [vmem:[%s505 + $0x48] sm:$0xff]
        %v516 = vld [vmem:[%s505 + $0x50] sm:$0xff]
        %v517 = vld [vmem:[%s505 + $0x58] sm:$0x3]
        %v518 = vld [vmem:[#allocation2] sm:$0xff]
        %v519 = vld [vmem:[#allocation2 + $0x8] sm:$0xff]
        %v520 = vmul.f32 %v506, %v518
        %v521 = vmul.f32 %v507, %v519
        %v522 = vmul.f32 %v509, %v518
        %v523 = vmul.f32 %v510, %v519
        %v524 = vmul.f32 %v512, %v518
        %v525 = vmul.f32 %v513, %v519
        %v526 = vmul.f32 %v515, %v518
        %v527 = vmul.f32 %v516, %v519
        %v528 = vadd.f32 %v520, 0.0
        %v529 = vadd.f32 %v521, 0.0
        %v530 = vadd.f32 %v522, 0.0
        %v531 = vadd.f32 %v523, 0.0
        %v532 = vadd.f32 %v524, 0.0
        %v533 = vadd.f32 %v525, 0.0
        %v534 = vadd.f32 %v526, 0.0
        %v535 = vadd.f32 %v527, 0.0
        %s536 = scalar_lea.vmem [#allocation2], 48
        %v537 = vld [vmem:[%s536] sm:$0xff]
        %v538 = vld [vmem:[%s536 + $0x8] sm:$0xff]
        %vm541 = vcmask 1040384
        %v542 = vrot.slane %v537, 7
        %v543 = vrot.slane %v538, 7
        %v544 = vsel %vm541, %v542, %v543
        %v548 = vmul.f32 %v506, %v542
        %v549 = vmul.f32 %v507, %v544
        %v550 = vmul.f32 %v508, %v543
        %v551 = vmul.f32 %v509, %v542
        %v552 = vmul.f32 %v510, %v544
        %v553 = vmul.f32 %v511, %v543
        %v554 = vmul.f32 %v512, %v542
        %v555 = vmul.f32 %v513, %v544
        %v556 = vmul.f32 %v514, %v543
        %v557 = vmul.f32 %v515, %v542
        %v558 = vmul.f32 %v516, %v544
        %v559 = vmul.f32 %v517, %v543
        %vm572 = vcmask 1046528
        %v573 = vrot.slane %v548, 1
        %v574 = vrot.slane %v549, 1
        %v575 = vsel %vm572, %v573, %v574
        %v576 = vrot.slane %v550, 1
        %v577 = vsel %vm572, %v574, %v576
        %v578 = vrot.slane %v551, 1
        %v579 = vrot.slane %v552, 1
        %v580 = vsel %vm572, %v578, %v579
        %v581 = vrot.slane %v553, 1
        %v582 = vsel %vm572, %v579, %v581
        %v583 = vrot.slane %v554, 1
        %v584 = vrot.slane %v555, 1
        %v585 = vsel %vm572, %v583, %v584
        %v586 = vrot.slane %v556, 1
        %v587 = vsel %vm572, %v584, %v586
        %v588 = vrot.slane %v557, 1
        %v589 = vrot.slane %v558, 1
        %v590 = vsel %vm572, %v588, %v589
        %v591 = vrot.slane %v559, 1
        %v592 = vsel %vm572, %v589, %v591
        %v601 = vadd.f32 %v528, %v575
        %v602 = vadd.f32 %v529, %v577
        %v603 = vadd.f32 %v530, %v580
        %v604 = vadd.f32 %v531, %v582
        %v605 = vadd.f32 %v532, %v585
        %v606 = vadd.f32 %v533, %v587
        %v607 = vadd.f32 %v534, %v590
        %v608 = vadd.f32 %v535, %v592
        %s609 = scalar_lea.vmem [#allocation2], 96
        %v610 = vld [vmem:[%s609] sm:$0xff]
        %v611 = vld [vmem:[%s609 + $0x8] sm:$0xff]
        %vm614 = vcmask 1041408
        %v615 = vrot.slane %v610, 6
        %v616 = vrot.slane %v611, 6
        %v617 = vsel %vm614, %v615, %v616
        %v621 = vmul.f32 %v506, %v615
        %v622 = vmul.f32 %v507, %v617
        %v623 = vmul.f32 %v508, %v616
        %v624 = vmul.f32 %v509, %v615
        %v625 = vmul.f32 %v510, %v617
        %v626 = vmul.f32 %v511, %v616
        %v627 = vmul.f32 %v512, %v615
        %v628 = vmul.f32 %v513, %v617
        %v629 = vmul.f32 %v514, %v616
        %v630 = vmul.f32 %v515, %v615
        %v631 = vmul.f32 %v516, %v617
        %v632 = vmul.f32 %v517, %v616
        %vm645 = vcmask 1045504
        %v646 = vrot.slane %v621, 2
        %v647 = vrot.slane %v622, 2
        %v648 = vsel %vm645, %v646, %v647
        %v649 = vrot.slane %v623, 2
        %v650 = vsel %vm645, %v647, %v649
        %v651 = vrot.slane %v624, 2
        %v652 = vrot.slane %v625, 2
        %v653 = vsel %vm645, %v651, %v652
        %v654 = vrot.slane %v626, 2
        %v655 = vsel %vm645, %v652, %v654
        %v656 = vrot.slane %v627, 2
        %v657 = vrot.slane %v628, 2
        %v658 = vsel %vm645, %v656, %v657
        %v659 = vrot.slane %v629, 2
        %v660 = vsel %vm645, %v657, %v659
        %v661 = vrot.slane %v630, 2
        %v662 = vrot.slane %v631, 2
        %v663 = vsel %vm645, %v661, %v662
        %v664 = vrot.slane %v632, 2
        %v665 = vsel %vm645, %v662, %v664
        %v674 = vadd.f32 %v601, %v648
        %v675 = vadd.f32 %v602, %v650
        %v676 = vadd.f32 %v603, %v653
        %v677 = vadd.f32 %v604, %v655
        %v678 = vadd.f32 %v605, %v658
        %v679 = vadd.f32 %v606, %v660
        %v680 = vadd.f32 %v607, %v663
        %v681 = vadd.f32 %v608, %v665
        %s682 = scalar_lea.vmem [#allocation2], 16
        %v683 = vld [vmem:[%s682] sm:$0xff]
        %v684 = vld [vmem:[%s682 + $0x8] sm:$0xff]
        %687 = vrot.lane.b32.xlu0 %v683, 1
        %v688 = vpop.permute.xlu0 %687
        %689 = vrot.lane.b32.xlu0 %v684, 1
        %v690 = vpop.permute.xlu0 %689
        %v693 = vmul.f32 %v506, %v688
        %v694 = vmul.f32 %v507, %v690
        %v695 = vmul.f32 %v509, %v688
        %v696 = vmul.f32 %v510, %v690
        %v697 = vmul.f32 %v512, %v688
        %v698 = vmul.f32 %v513, %v690
        %v699 = vmul.f32 %v515, %v688
        %v700 = vmul.f32 %v516, %v690
        %709 = vrot.lane.b32.xlu0 %v693, 127
        %v710 = vpop.permute.xlu0 %709
        %711 = vrot.lane.b32.xlu0 %v694, 127
        %v712 = vpop.permute.xlu0 %711
        %713 = vrot.lane.b32.xlu0 %v695, 127
        %v714 = vpop.permute.xlu0 %713
        %715 = vrot.lane.b32.xlu0 %v696, 127
        %v716 = vpop.permute.xlu0 %715
        %717 = vrot.lane.b32.xlu0 %v697, 127
        %v718 = vpop.permute.xlu0 %717
        %719 = vrot.lane.b32.xlu0 %v698, 127
        %v720 = vpop.permute.xlu0 %719
        %721 = vrot.lane.b32.xlu0 %v699, 127
        %v722 = vpop.permute.xlu0 %721
        %723 = vrot.lane.b32.xlu0 %v700, 127
        %v724 = vpop.permute.xlu0 %723
        %v733 = vadd.f32 %v674, %v710
        %v734 = vadd.f32 %v675, %v712
        %v735 = vadd.f32 %v676, %v714
        %v736 = vadd.f32 %v677, %v716
        %v737 = vadd.f32 %v678, %v718
        %v738 = vadd.f32 %v679, %v720
        %v739 = vadd.f32 %v680, %v722
        %v740 = vadd.f32 %v681, %v724
        %s741 = scalar_lea.vmem [#allocation2], 64
        %v742 = vld [vmem:[%s741] sm:$0xff]
        %v743 = vld [vmem:[%s741 + $0x8] sm:$0xff]
        %v746 = vrot.slane %v742, 7
        %v747 = vrot.slane %v743, 7
        %v748 = vsel %vm541, %v746, %v747
        %749 = vrot.lane.b32.xlu0 %v746, 1
        %v750 = vpop.permute.xlu0 %749
        %751 = vrot.lane.b32.xlu0 %v748, 1
        %v752 = vpop.permute.xlu0 %751
        %753 = vrot.lane.b32.xlu0 %v747, 1
        %v754 = vpop.permute.xlu0 %753
        %v758 = vmul.f32 %v506, %v750
        %v759 = vmul.f32 %v507, %v752
        %v760 = vmul.f32 %v508, %v754
        %v761 = vmul.f32 %v509, %v750
        %v762 = vmul.f32 %v510, %v752
        %v763 = vmul.f32 %v511, %v754
        %v764 = vmul.f32 %v512, %v750
        %v765 = vmul.f32 %v513, %v752
        %v766 = vmul.f32 %v514, %v754
        %v767 = vmul.f32 %v515, %v750
        %v768 = vmul.f32 %v516, %v752
        %v769 = vmul.f32 %v517, %v754
        %v782 = vrot.slane %v758, 1
        %v783 = vrot.slane %v759, 1
        %v784 = vsel %vm572, %v782, %v783
        %v785 = vrot.slane %v760, 1
        %v786 = vsel %vm572, %v783, %v785
        %v787 = vrot.slane %v761, 1
        %v788 = vrot.slane %v762, 1
        %v789 = vsel %vm572, %v787, %v788
        %v790 = vrot.slane %v763, 1
        %v791 = vsel %vm572, %v788, %v790
        %v792 = vrot.slane %v764, 1
        %v793 = vrot.slane %v765, 1
        %v794 = vsel %vm572, %v792, %v793
        %v795 = vrot.slane %v766, 1
        %v796 = vsel %vm572, %v793, %v795
        %v797 = vrot.slane %v767, 1
        %v798 = vrot.slane %v768, 1
        %v799 = vsel %vm572, %v797, %v798
        %v800 = vrot.slane %v769, 1
        %v801 = vsel %vm572, %v798, %v800
        %802 = vrot.lane.b32.xlu0 %v784, 127
        %v803 = vpop.permute.xlu0 %802
        %804 = vrot.lane.b32.xlu0 %v786, 127
        %v805 = vpop.permute.xlu0 %804
        %806 = vrot.lane.b32.xlu0 %v789, 127
        %v807 = vpop.permute.xlu0 %806
        %808 = vrot.lane.b32.xlu0 %v791, 127
        %v809 = vpop.permute.xlu0 %808
        %810 = vrot.lane.b32.xlu0 %v794, 127
        %v811 = vpop.permute.xlu0 %810
        %812 = vrot.lane.b32.xlu0 %v796, 127
        %v813 = vpop.permute.xlu0 %812
        %814 = vrot.lane.b32.xlu0 %v799, 127
        %v815 = vpop.permute.xlu0 %814
        %816 = vrot.lane.b32.xlu0 %v801, 127
        %v817 = vpop.permute.xlu0 %816
        %v826 = vadd.f32 %v733, %v803
        %v827 = vadd.f32 %v734, %v805
        %v828 = vadd.f32 %v735, %v807
        %v829 = vadd.f32 %v736, %v809
        %v830 = vadd.f32 %v737, %v811
        %v831 = vadd.f32 %v738, %v813
        %v832 = vadd.f32 %v739, %v815
        %v833 = vadd.f32 %v740, %v817
        %s834 = scalar_lea.vmem [#allocation2], 112
        %v835 = vld [vmem:[%s834] sm:$0xff]
        %v836 = vld [vmem:[%s834 + $0x8] sm:$0xff]
        %v839 = vrot.slane %v835, 6
        %v840 = vrot.slane %v836, 6
        %v841 = vsel %vm614, %v839, %v840
        %842 = vrot.lane.b32.xlu0 %v839, 1
        %v843 = vpop.permute.xlu0 %842
        %844 = vrot.lane.b32.xlu0 %v841, 1
        %v845 = vpop.permute.xlu0 %844
        %846 = vrot.lane.b32.xlu0 %v840, 1
        %v847 = vpop.permute.xlu0 %846
        %v851 = vmul.f32 %v506, %v843
        %v852 = vmul.f32 %v507, %v845
        %v853 = vmul.f32 %v508, %v847
        %v854 = vmul.f32 %v509, %v843
        %v855 = vmul.f32 %v510, %v845
        %v856 = vmul.f32 %v511, %v847
        %v857 = vmul.f32 %v512, %v843
        %v858 = vmul.f32 %v513, %v845
        %v859 = vmul.f32 %v514, %v847
        %v860 = vmul.f32 %v515, %v843
        %v861 = vmul.f32 %v516, %v845
        %v862 = vmul.f32 %v517, %v847
        %v875 = vrot.slane %v851, 2
        %v876 = vrot.slane %v852, 2
        %v877 = vsel %vm645, %v875, %v876
        %v878 = vrot.slane %v853, 2
        %v879 = vsel %vm645, %v876, %v878
        %v880 = vrot.slane %v854, 2
        %v881 = vrot.slane %v855, 2
        %v882 = vsel %vm645, %v880, %v881
        %v883 = vrot.slane %v856, 2
        %v884 = vsel %vm645, %v881, %v883
        %v885 = vrot.slane %v857, 2
        %v886 = vrot.slane %v858, 2
        %v887 = vsel %vm645, %v885, %v886
        %v888 = vrot.slane %v859, 2
        %v889 = vsel %vm645, %v886, %v888
        %v890 = vrot.slane %v860, 2
        %v891 = vrot.slane %v861, 2
        %v892 = vsel %vm645, %v890, %v891
        %v893 = vrot.slane %v862, 2
        %v894 = vsel %vm645, %v891, %v893
        %895 = vrot.lane.b32.xlu0 %v877, 127
        %v896 = vpop.permute.xlu0 %895
        %897 = vrot.lane.b32.xlu0 %v879, 127
        %v898 = vpop.permute.xlu0 %897
        %899 = vrot.lane.b32.xlu0 %v882, 127
        %v900 = vpop.permute.xlu0 %899
        %901 = vrot.lane.b32.xlu0 %v884, 127
        %v902 = vpop.permute.xlu0 %901
        %903 = vrot.lane.b32.xlu0 %v887, 127
        %v904 = vpop.permute.xlu0 %903
        %905 = vrot.lane.b32.xlu0 %v889, 127
        %v906 = vpop.permute.xlu0 %905
        %907 = vrot.lane.b32.xlu0 %v892, 127
        %v908 = vpop.permute.xlu0 %907
        %909 = vrot.lane.b32.xlu0 %v894, 127
        %v910 = vpop.permute.xlu0 %909
        %v919 = vadd.f32 %v826, %v896
        %v920 = vadd.f32 %v827, %v898
        %v921 = vadd.f32 %v828, %v900
        %v922 = vadd.f32 %v829, %v902
        %v923 = vadd.f32 %v830, %v904
        %v924 = vadd.f32 %v831, %v906
        %v925 = vadd.f32 %v832, %v908
        %v926 = vadd.f32 %v833, %v910
        %s927 = scalar_lea.vmem [#allocation2], 32
        %v928 = vld [vmem:[%s927] sm:$0xff]
        %v929 = vld [vmem:[%s927 + $0x8] sm:$0xff]
        %932 = vrot.lane.b32.xlu0 %v928, 2
        %v933 = vpop.permute.xlu0 %932
        %934 = vrot.lane.b32.xlu0 %v929, 2
        %v935 = vpop.permute.xlu0 %934
        %v938 = vmul.f32 %v506, %v933
        %v939 = vmul.f32 %v507, %v935
        %v940 = vmul.f32 %v509, %v933
        %v941 = vmul.f32 %v510, %v935
        %v942 = vmul.f32 %v512, %v933
        %v943 = vmul.f32 %v513, %v935
        %v944 = vmul.f32 %v515, %v933
        %v945 = vmul.f32 %v516, %v935
        %954 = vrot.lane.b32.xlu0 %v938, 126
        %v955 = vpop.permute.xlu0 %954
        %956 = vrot.lane.b32.xlu0 %v939, 126
        %v957 = vpop.permute.xlu0 %956
        %958 = vrot.lane.b32.xlu0 %v940, 126
        %v959 = vpop.permute.xlu0 %958
        %960 = vrot.lane.b32.xlu0 %v941, 126
        %v961 = vpop.permute.xlu0 %960
        %962 = vrot.lane.b32.xlu0 %v942, 126
        %v963 = vpop.permute.xlu0 %962
        %964 = vrot.lane.b32.xlu0 %v943, 126
        %v965 = vpop.permute.xlu0 %964
        %966 = vrot.lane.b32.xlu0 %v944, 126
        %v967 = vpop.permute.xlu0 %966
        %968 = vrot.lane.b32.xlu0 %v945, 126
        %v969 = vpop.permute.xlu0 %968
        %v978 = vadd.f32 %v919, %v955
        %v979 = vadd.f32 %v920, %v957
        %v980 = vadd.f32 %v921, %v959
        %v981 = vadd.f32 %v922, %v961
        %v982 = vadd.f32 %v923, %v963
        %v983 = vadd.f32 %v924, %v965
        %v984 = vadd.f32 %v925, %v967
        %v985 = vadd.f32 %v926, %v969
        %s986 = scalar_lea.vmem [#allocation2], 80
        %v987 = vld [vmem:[%s986] sm:$0xff]
        %v988 = vld [vmem:[%s986 + $0x8] sm:$0xff]
        %v991 = vrot.slane %v987, 7
        %v992 = vrot.slane %v988, 7
        %v993 = vsel %vm541, %v991, %v992
        %994 = vrot.lane.b32.xlu0 %v991, 2
        %v995 = vpop.permute.xlu0 %994
        %996 = vrot.lane.b32.xlu0 %v993, 2
        %v997 = vpop.permute.xlu0 %996
        %998 = vrot.lane.b32.xlu0 %v992, 2
        %v999 = vpop.permute.xlu0 %998
        %v1003 = vmul.f32 %v506, %v995
        %v1004 = vmul.f32 %v507, %v997
        %v1005 = vmul.f32 %v508, %v999
        %v1006 = vmul.f32 %v509, %v995
        %v1007 = vmul.f32 %v510, %v997
        %v1008 = vmul.f32 %v511, %v999
        %v1009 = vmul.f32 %v512, %v995
        %v1010 = vmul.f32 %v513, %v997
        %v1011 = vmul.f32 %v514, %v999
        %v1012 = vmul.f32 %v515, %v995
        %v1013 = vmul.f32 %v516, %v997
        %v1014 = vmul.f32 %v517, %v999
        %v1027 = vrot.slane %v1003, 1
        %v1028 = vrot.slane %v1004, 1
        %v1029 = vsel %vm572, %v1027, %v1028
        %v1030 = vrot.slane %v1005, 1
        %v1031 = vsel %vm572, %v1028, %v1030
        %v1032 = vrot.slane %v1006, 1
        %v1033 = vrot.slane %v1007, 1
        %v1034 = vsel %vm572, %v1032, %v1033
        %v1035 = vrot.slane %v1008, 1
        %v1036 = vsel %vm572, %v1033, %v1035
        %v1037 = vrot.slane %v1009, 1
        %v1038 = vrot.slane %v1010, 1
        %v1039 = vsel %vm572, %v1037, %v1038
        %v1040 = vrot.slane %v1011, 1
        %v1041 = vsel %vm572, %v1038, %v1040
        %v1042 = vrot.slane %v1012, 1
        %v1043 = vrot.slane %v1013, 1
        %v1044 = vsel %vm572, %v1042, %v1043
        %v1045 = vrot.slane %v1014, 1
        %v1046 = vsel %vm572, %v1043, %v1045
        %1047 = vrot.lane.b32.xlu0 %v1029, 126
        %v1048 = vpop.permute.xlu0 %1047
        %1049 = vrot.lane.b32.xlu0 %v1031, 126
        %v1050 = vpop.permute.xlu0 %1049
        %1051 = vrot.lane.b32.xlu0 %v1034, 126
        %v1052 = vpop.permute.xlu0 %1051
        %1053 = vrot.lane.b32.xlu0 %v1036, 126
        %v1054 = vpop.permute.xlu0 %1053
        %1055 = vrot.lane.b32.xlu0 %v1039, 126
        %v1056 = vpop.permute.xlu0 %1055
        %1057 = vrot.lane.b32.xlu0 %v1041, 126
        %v1058 = vpop.permute.xlu0 %1057
        %1059 = vrot.lane.b32.xlu0 %v1044, 126
        %v1060 = vpop.permute.xlu0 %1059
        %1061 = vrot.lane.b32.xlu0 %v1046, 126
        %v1062 = vpop.permute.xlu0 %1061
        %v1071 = vadd.f32 %v978, %v1048
        %v1072 = vadd.f32 %v979, %v1050
        %v1073 = vadd.f32 %v980, %v1052
        %v1074 = vadd.f32 %v981, %v1054
        %v1075 = vadd.f32 %v982, %v1056
        %v1076 = vadd.f32 %v983, %v1058
        %v1077 = vadd.f32 %v984, %v1060
        %v1078 = vadd.f32 %v985, %v1062
        %s1079 = scalar_lea.vmem [#allocation2], 128
        %v1080 = vld [vmem:[%s1079] sm:$0xff]
        %v1081 = vld [vmem:[%s1079 + $0x8] sm:$0xff]
        %v1084 = vrot.slane %v1080, 6
        %v1085 = vrot.slane %v1081, 6
        %v1086 = vsel %vm614, %v1084, %v1085
        %1087 = vrot.lane.b32.xlu0 %v1084, 2
        %v1088 = vpop.permute.xlu0 %1087
        %1089 = vrot.lane.b32.xlu0 %v1086, 2
        %v1090 = vpop.permute.xlu0 %1089
        %1091 = vrot.lane.b32.xlu0 %v1085, 2
        %v1092 = vpop.permute.xlu0 %1091
        %v1096 = vmul.f32 %v506, %v1088
        %v1097 = vmul.f32 %v507, %v1090
        %v1098 = vmul.f32 %v508, %v1092
        %v1099 = vmul.f32 %v509, %v1088
        %v1100 = vmul.f32 %v510, %v1090
        %v1101 = vmul.f32 %v511, %v1092
        %v1102 = vmul.f32 %v512, %v1088
        %v1103 = vmul.f32 %v513, %v1090
        %v1104 = vmul.f32 %v514, %v1092
        %v1105 = vmul.f32 %v515, %v1088
        %v1106 = vmul.f32 %v516, %v1090
        %v1107 = vmul.f32 %v517, %v1092
        %v1120 = vrot.slane %v1096, 2
        %v1121 = vrot.slane %v1097, 2
        %v1122 = vsel %vm645, %v1120, %v1121
        %v1123 = vrot.slane %v1098, 2
        %v1124 = vsel %vm645, %v1121, %v1123
        %v1125 = vrot.slane %v1099, 2
        %v1126 = vrot.slane %v1100, 2
        %v1127 = vsel %vm645, %v1125, %v1126
        %v1128 = vrot.slane %v1101, 2
        %v1129 = vsel %vm645, %v1126, %v1128
        %v1130 = vrot.slane %v1102, 2
        %v1131 = vrot.slane %v1103, 2
        %v1132 = vsel %vm645, %v1130, %v1131
        %v1133 = vrot.slane %v1104, 2
        %v1134 = vsel %vm645, %v1131, %v1133
        %v1135 = vrot.slane %v1105, 2
        %v1136 = vrot.slane %v1106, 2
        %v1137 = vsel %vm645, %v1135, %v1136
        %v1138 = vrot.slane %v1107, 2
        %v1139 = vsel %vm645, %v1136, %v1138
        %1140 = vrot.lane.b32.xlu0 %v1122, 126
        %v1141 = vpop.permute.xlu0 %1140
        %1142 = vrot.lane.b32.xlu0 %v1124, 126
        %v1143 = vpop.permute.xlu0 %1142
        %1144 = vrot.lane.b32.xlu0 %v1127, 126
        %v1145 = vpop.permute.xlu0 %1144
        %1146 = vrot.lane.b32.xlu0 %v1129, 126
        %v1147 = vpop.permute.xlu0 %1146
        %1148 = vrot.lane.b32.xlu0 %v1132, 126
        %v1149 = vpop.permute.xlu0 %1148
        %1150 = vrot.lane.b32.xlu0 %v1134, 126
        %v1151 = vpop.permute.xlu0 %1150
        %1152 = vrot.lane.b32.xlu0 %v1137, 126
        %v1153 = vpop.permute.xlu0 %1152
        %1154 = vrot.lane.b32.xlu0 %v1139, 126
        %v1155 = vpop.permute.xlu0 %1154
        %v1164 = vadd.f32 %v1071, %v1141
        %v1165 = vadd.f32 %v1072, %v1143
        %v1166 = vadd.f32 %v1073, %v1145
        %v1167 = vadd.f32 %v1074, %v1147
        %v1168 = vadd.f32 %v1075, %v1149
        %v1169 = vadd.f32 %v1076, %v1151
        %v1170 = vadd.f32 %v1077, %v1153
        %v1171 = vadd.f32 %v1078, %v1155
        %s1172 = smul.u32 0, 16
        %s1173 = scalar_lea.vmem %s220, %s1172 [#allocation3]
        %vm1174 = vcmask 130048
        %1175 = vst.msk [vmem:[%s1173] sm:$0xff] %vm1174, %v1164
        %1176 = vst.msk [vmem:[%s1173 + $0x8] sm:$0xff] %vm1174, %v1165
        %1177 = vst.msk [vmem:[%s1173 + $0x10] sm:$0xff] %vm1174, %v1166
        %1178 = vst.msk [vmem:[%s1173 + $0x18] sm:$0xff] %vm1174, %v1167
        %1179 = vst.msk [vmem:[%s1173 + $0x20] sm:$0xff] %vm1174, %v1168
        %1180 = vst.msk [vmem:[%s1173 + $0x28] sm:$0xff] %vm1174, %v1169
        %1181 = vst.msk [vmem:[%s1173 + $0x30] sm:$0xff] %vm1174, %v1170
        %1182 = vst.msk [vmem:[%s1173 + $0x38] sm:$0xff] %vm1174, %v1171
        %s1183 = sand.u32 %s119, 1
        %s1184 = scalar_lea.sflag [#allocation4], %s1183
        %s1185 = sand.u32 %s119, 1
        %s1186 = smul.addr %s1185, 64
        %s1187 = scalar_lea.vmem [#allocation3], %s1186
        // Predicated region
        $region37: #{tpu_custom_call.1} parent=31 // pred_check
          %p1188 = pneg %p129
        $region38: #{tpu_custom_call.1} parent=31 // pred_check_branch
          %1190 = sbr.rel (%p1188) target = $region40
        $region39: #{tpu_custom_call.1} parent=31 // pred_region
          %s1191 = smul.u32 4, %s22
          %s1193 = ssub.s32 1024, 1024
          %1194 = vsyncadd %s1184, %s1193
          %s1195 = smul.addr %s1191, 2
          %s1196 = smul.addr %s21, 8
          %s1197 = sadd.s32 %s1195, %s1196
          %s1198 = smul.addr %s1197, 128
          %s1199 = scalar_lea.hbm %s3, %s1198
          %s1200 = sshll.u32 %s1187, 4
          %s1201 = int_to_ptr.vmem [resolvable:$true] %s1200
          %1206 = dma.vmem_to_hbm [thread:$0]  %s1201, 1024, %s1199, %s1184, 128, 128, 8
        $region40: #{tpu_custom_call.1} parent=31 // pred_fallthru
          _
      $region32: #{tpu_custom_call.1} parent=5 // pred_fallthru
        _
      %p1207 = scmp.le.s32.totalorder 2, %s12
      // Predicated region
      $region41: #{tpu_custom_call.1} parent=5 // pred_check
        %p1208 = pneg %p1207
      $region42: #{tpu_custom_call.1} parent=5 // pred_check_branch
        %1210 = sbr.rel (%p1208) target = $region44
      $region43: #{tpu_custom_call.1} parent=5 // pred_region
        %s1211 = ssub.s32 %s12, 2
        // Predicated region
        $region45: #{tpu_custom_call.1} parent=43 // pred_check
          %p1212 = pneg %p135
        $region46: #{tpu_custom_call.1} parent=43 // pred_check_branch
          %1214 = sbr.rel (%p1212) target = $region48
        $region47: #{tpu_custom_call.1} parent=43 // pred_region
          %s1215 = sand.u32 %s120, 1
          %s1216 = scalar_lea.sflag [#allocation4], %s1215
          %s1217 = sand.u32 %s120, 1
          %s1218 = smul.addr %s1217, 64
          %s1219 = scalar_lea.vmem [#allocation3], %s1218
          %1220 = dma.done %s1216, 1024
        $region48: #{tpu_custom_call.1} parent=43 // pred_fallthru
          _
      $region44: #{tpu_custom_call.1} parent=5 // pred_fallthru
        _
    $region6: #{tpu_custom_call.1} parent=1 // loop_footer
      %s16 = sadd.s32 1, %s12
    $region7: #{tpu_custom_call.1} parent=1 // loop_footer_branch
      %11 = sbr.rel target = $region3
    $region8: #{tpu_custom_call.1} parent=1 // loop_exit
      _
    %1221 = vsyncpa [#allocation4], 1
    %s1222 = scalar_lea.sflag [#allocation4], 1
    %1223 = vsyncpa %s1222, 1

</llo_original>
